<compile_context>
chip_gen: v6e
topology: v6e:2x2x1
jax: 0.10.0
libtpu: 0.0.40
codegen_flags: <defaults>
</compile_context>

<pallas_src>
import functools
from collections import namedtuple

import numpy as np
import jax
import jax.numpy as jnp
from jax import lax
from jax.experimental import pallas as pl
from jax.experimental.pallas import tpu as pltpu

ConvCfg = namedtuple("ConvCfg", "Hin Win Cin KH KW stride pad OH OW Cout")

_LEAKY_SLOPE = 0.01
_TAIL_NPAD = 128          # lane-pad the two tiny head GEMMs to one 128-lane tile
_VMEM_LIMIT = 32 * 1024 * 1024   # safe on v5e/v6e (128 MiB) and v7x (64 MiB)


# ----------------------------------------------------------------------------
# Spectral-norm sigma (one power-iteration step, as in the SpectralNorm module)
# ----------------------------------------------------------------------------
def _l2normalize(v, eps=1e-12):
    return v / (jnp.linalg.norm(v) + eps)


def _sn_sigma(w_oihw, u):
    wm = w_oihw.reshape(w_oihw.shape[0], -1)
    v = _l2normalize(wm.T @ u)
    u_new = _l2normalize(wm @ v)
    return jnp.dot(u_new, wm @ v)


def spectral_norm_weight(w_oihw, u):
    return w_oihw / _sn_sigma(w_oihw, u)


# ----------------------------------------------------------------------------
# In-kernel conv stage: KH accumulated 2-D GEMMs on VMEM-resident values
# ----------------------------------------------------------------------------
def _gather_rows(act, hs):
    """Static row gather; out-of-range rows become zero rows (spatial padding)."""
    hin, wc = act.shape
    zero = None
    pieces = []
    for h in hs:
        if 0 <= h < hin:
            pieces.append(act[h:h + 1, :])
        else:
            if zero is None:
                zero = jnp.zeros((1, wc), act.dtype)
            pieces.append(zero)
    if len(pieces) == 1:
        return pieces[0]
    return jnp.concatenate(pieces, axis=0)


def _conv_stage(act, wbig_ref, cfg, inv_sigma, bias_row, neg_slope):
    """One conv layer.

    act:       (Hin, Win*Cin) f32 value, row h holds the (w, c)-packed input row.
    wbig_ref:  (KH, Win*Cin, N) bf16 ref; tap-row i weight with the W-dimension
               convolution (incl. column padding) folded into a banded matrix.
    Epilogue (f32): * 1/sigma (spectral norm), + bias, LeakyReLU.
    """
    n_out = wbig_ref.shape[2]
    acc = jnp.zeros((cfg.OH, n_out), jnp.float32)
    for i in range(cfg.KH):
        hs = [cfg.stride * oh + i - cfg.pad for oh in range(cfg.OH)]
        rows = _gather_rows(act, hs).astype(jnp.bfloat16)        # (OH, Win*Cin)
        acc = acc + jnp.dot(rows, wbig_ref[i],
                            preferred_element_type=jnp.float32)  # (OH, N)
    out = acc * inv_sigma
    if bias_row is not None:
        out = out + bias_row
    if neg_slope is not None:
        out = jnp.where(out >= 0.0, out, neg_slope * out)
    return out


def _fused_forward_kernel(inv_s_ref, x_ref,
                          w0_ref, w1_ref, w2_ref, wc1_ref, wc2_ref,
                          b0_ref, b1_ref, b2_ref,
                          out_real_ref, out_aux_ref, *, cfgs):
    act = x_ref[0]                                   # (H0, W0*Cin0) f32
    wrefs = (w0_ref, w1_ref, w2_ref)
    brefs = (b0_ref, b1_ref, b2_ref)
    for l in range(3):                               # main: SN(conv) + LeakyReLU
        act = _conv_stage(act, wrefs[l], cfgs[l], inv_s_ref[l],
                          brefs[l][...], _LEAKY_SLOPE)
    h = act                                          # (Hh, Wh*Cd) f32, VMEM-resident

    c3, c4 = cfgs[3], cfgs[4]
    o_real = _conv_stage(h, wc1_ref, c3, inv_s_ref[3], None, None)
    o_aux = _conv_stage(h, wc2_ref, c4, inv_s_ref[4], None, None)
    out_real_ref[0] = o_real[:, :c3.OW * c3.Cout]    # slice off lane padding
    out_aux_ref[0] = o_aux[:, :c4.OW * c4.Cout]


# ----------------------------------------------------------------------------
# One-time weight preparation (hoisted out of the per-forward path)
# ----------------------------------------------------------------------------
def _build_wbig_np(w_oihw, Win, stride, pad, n_pad_to=None):
    """Fold the W-dimension of the conv (incl. column padding) into a banded
    GEMM matrix per kernel row:  wb[i, win*Cin+c, ow*Cout+co] = w[co,c,i,j]."""
    w = np.asarray(w_oihw, np.float32)
    Cout, Cin, KH, KW = w.shape
    OW = (Win + 2 * pad - KW) // stride + 1
    n = OW * Cout if n_pad_to is None else max(OW * Cout, n_pad_to)
    wb = np.zeros((KH, Win * Cin, n), np.float32)
    for i in range(KH):
        for ow in range(OW):
            for j in range(KW):
                win = stride * ow + j - pad
                if 0 <= win < Win:
                    wb[i, win * Cin:(win + 1) * Cin,
                       ow * Cout:(ow + 1) * Cout] = w[:, :, i, j].T
    return wb


def prepare_discriminator(params, image_size=16, init_stride=2):
    cfgs, wbig, bias_rows, sn = [], [], [], []
    H = W = image_size
    Cin = 3
    for li, (w, b, u) in enumerate(params["main"]):
        Cout, _, KH, KW = w.shape
        s = init_stride if li == 0 else 2
        p = 1
        OH = (H + 2 * p - KH) // s + 1
        OW = (W + 2 * p - KW) // s + 1
        cfgs.append(ConvCfg(H, W, Cin, KH, KW, s, p, OH, OW, Cout))
        wbig.append(jnp.asarray(_build_wbig_np(w, W, s, p), jnp.bfloat16))
        bias_rows.append(jnp.asarray(
            np.tile(np.asarray(b, np.float32), OW).reshape(1, OW * Cout)))
        sn.append((w, u))
        H, W, Cin = OH, OW, Cout
    # Heads: conv1 (k3 s1 p1, no bias), conv2 (k=k_size s1 p0, no bias).
    for wkey, ukey, p in (("conv1_w", "conv1_u", 1), ("conv2_w", "conv2_u", 0)):
        w = params[wkey]
        Cout, _, KH, KW = w.shape
        OH = (H + 2 * p - KH) // 1 + 1
        OW = (W + 2 * p - KW) // 1 + 1
        cfgs.append(ConvCfg(H, W, Cin, KH, KW, 1, p, OH, OW, Cout))
        wbig.append(jnp.asarray(
            _build_wbig_np(w, W, 1, p, n_pad_to=_TAIL_NPAD), jnp.bfloat16))
        sn.append((w, params[ukey]))
    return {"cfgs": tuple(cfgs), "wbig": wbig, "bias": bias_rows, "sn": sn}


# ----------------------------------------------------------------------------
# Fused forward (single pallas_call)
# ----------------------------------------------------------------------------
def discriminator_sn_pallas(x_nchw, prep):
    cfgs = prep["cfgs"]
    c0, c3, c4 = cfgs[0], cfgs[3], cfgs[4]
    B = x_nchw.shape[0]

    # NCHW -> NHWC -> (B, H, W*C) row-packed layout consumed by the kernel.
    x2d = jnp.transpose(x_nchw, (0, 2, 3, 1)).astype(jnp.float32)
    x2d = x2d.reshape(B, c0.Hin, c0.Win * c0.Cin)

    # Per-forward spectral-norm scalars only (weights themselves were folded
    # into bf16 GEMM matrices once, at prepare time).
    inv_sigmas = jnp.stack(
        [1.0 / _sn_sigma(w, u) for (w, u) in prep["sn"]]).astype(jnp.float32)

    out_shapes = (
        jax.ShapeDtypeStruct((B, c3.OH, c3.OW * c3.Cout), jnp.float32),
        jax.ShapeDtypeStruct((B, c4.OH, c4.OW * c4.Cout), jnp.float32))

    in_specs = [
        pl.BlockSpec(memory_space=pltpu.MemorySpace.SMEM),              # 1/sigma
        pl.BlockSpec((1, c0.Hin, c0.Win * c0.Cin), lambda b: (b, 0, 0)),  # x
    ]
    in_specs += [pl.BlockSpec(w.shape, lambda b: (0, 0, 0)) for w in prep["wbig"]]
    in_specs += [pl.BlockSpec(bt.shape, lambda b: (0, 0)) for bt in prep["bias"]]
    out_specs = (
        pl.BlockSpec((1, c3.OH, c3.OW * c3.Cout), lambda b: (b, 0, 0)),
        pl.BlockSpec((1, c4.OH, c4.OW * c4.Cout), lambda b: (b, 0, 0)))

    kernel = functools.partial(_fused_forward_kernel, cfgs=cfgs)
    out_real2d, out_aux2d = pl.pallas_call(
        kernel,
        out_shape=out_shapes,
        grid=(B,),
        in_specs=in_specs,
        out_specs=out_specs,
        compiler_params=pltpu.CompilerParams(
            dimension_semantics=("parallel",),      # one sample per core on v7x
            vmem_limit_bytes=_VMEM_LIMIT),
    )(inv_sigmas, x2d, *prep["wbig"], *prep["bias"])

    # (B, OH, OW*Cout) -> NCHW, then .squeeze() faithful to the PyTorch module
    # (note: like torch, this also drops the batch dim when B == 1).
    out_real = out_real2d.reshape(B, c3.OH, c3.OW, c3.Cout).transpose(0, 3, 1, 2)
    out_aux = out_aux2d.reshape(B, c4.OH, c4.OW, c4.Cout).transpose(0, 3, 1, 2)
    return jnp.squeeze(out_real), jnp.squeeze(out_aux)


# ----------------------------------------------------------------------------
# Pure-JAX (lax.conv, f32) reference for correctness checking
# ----------------------------------------------------------------------------
def _conv_ref(x_nchw, w, b, stride, pad):
    out = lax.conv_general_dilated(
        x_nchw, w, (stride, stride), [(pad, pad), (pad, pad)],
        dimension_numbers=("NCHW", "OIHW", "NCHW"))
    if b is not None:
        out = out + b[None, :, None, None]
    return out


def discriminator_sn_reference(x_nchw, params, init_stride=2):
    x = x_nchw.astype(jnp.float32)
    for li, (w, b, u) in enumerate(params["main"]):
        w_sn = spectral_norm_weight(w, u)
        stride = init_stride if li == 0 else 2
        x = _conv_ref(x, w_sn, b, stride, 1)
        x = jnp.where(x >= 0.0, x, _LEAKY_SLOPE * x)
    h = x
    out_real = _conv_ref(h, spectral_norm_weight(params["conv1_w"], params["conv1_u"]), None, 1, 1)
    out_aux = _conv_ref(h, spectral_norm_weight(params["conv2_w"], params["conv2_u"]), None, 1, 0)
    return jnp.squeeze(out_real), jnp.squeeze(out_aux)


# ----------------------------------------------------------------------------
# Deterministic parameter construction (synthetic, matches module shapes)
# ----------------------------------------------------------------------------
def make_params(key, image_size=16, conv_dim=8, c_dim=5, repeat_num=3, init_stride=2):
    keys = jax.random.split(key, 32)
    kidx = 0

    def nxt():
        nonlocal kidx
        k = keys[kidx]
        kidx += 1
        return k

    params = {"main": []}
    curr_dim = conv_dim
    in_dim = 3
    for i in range(repeat_num):
        out_dim = conv_dim if i == 0 else min(curr_dim * 2, 1024)
        if i > 0:
            curr_dim = out_dim
        w = 0.05 * jax.random.normal(nxt(), (out_dim, in_dim, 4, 4), jnp.float32)
        b = 0.01 * jax.random.normal(nxt(), (out_dim,), jnp.float32)
        u = _l2normalize(jax.random.normal(nxt(), (out_dim,), jnp.float32))
        params["main"].append((w, b, u))
        in_dim = out_dim
    k_size = image_size // (2 ** repeat_num) + 2 - init_stride
    params["conv1_w"] = 0.05 * jax.random.normal(nxt(), (1, curr_dim, 3, 3), jnp.float32)
    params["conv1_u"] = _l2normalize(jax.random.normal(nxt(), (1,), jnp.float32))
    params["conv2_w"] = 0.05 * jax.random.normal(nxt(), (c_dim, curr_dim, k_size, k_size), jnp.float32)
    params["conv2_u"] = _l2normalize(jax.random.normal(nxt(), (c_dim,), jnp.float32))
    return params


if __name__ == "__main__":
    # Small configuration consistent with the module:
    # image_size=16, conv_dim=8, c_dim=5, repeat_num=3, init_stride=2
    #  -> k_size = 16/2^3 + 2 - 2 = 2, h spatial = 2x2, curr_dim = 32
    key = jax.random.PRNGKey(0)
    kp, kx = jax.random.split(key)
    params = make_params(kp, image_size=16, conv_dim=8, c_dim=5, repeat_num=3,
                         init_stride=2)
    prep = prepare_discriminator(params, image_size=16, init_stride=2)
    x = jax.random.normal(kx, (2, 3, 16, 16), jnp.float32)   # NCHW like PyTorch

    fwd = jax.jit(lambda xx: discriminator_sn_pallas(xx, prep))
    out_real, out_aux = fwd(x)
    jax.block_until_ready((out_real, out_aux))

    # Correctness vs. pure-JAX f32 lax.conv reference.  Tolerances account for
    # the (documented) bf16 MXU operands / f32 accumulation precision choice.
    ref_real, ref_aux = discriminator_sn_reference(x, params)
    assert out_real.shape == (2, 2, 2), out_real.shape
    assert out_aux.shape == (2, 5), out_aux.shape
    assert jnp.allclose(out_real, ref_real, rtol=5e-2, atol=2e-2), (
        float(jnp.max(jnp.abs(out_real - ref_real))))
    assert jnp.allclose(out_aux, ref_aux, rtol=5e-2, atol=2e-2), (
        float(jnp.max(jnp.abs(out_aux - ref_aux))))

    print("KERNEL_OK")
</pallas_src>

<mosaic_0001>
module attributes {stable_mosaic.version = 11 : i64} {
  func.func @_fused_forward_kernel(%arg0: i32, %arg1: memref<5xf32, #tpu.memory_space<smem>>, %arg2: memref<1x16x48xf32, #tpu.memory_space<vmem>>, %arg3: memref<4x48x64xbf16, #tpu.memory_space<vmem>>, %arg4: memref<4x64x64xbf16, #tpu.memory_space<vmem>>, %arg5: memref<4x64x64xbf16, #tpu.memory_space<vmem>>, %arg6: memref<3x64x128xbf16, #tpu.memory_space<vmem>>, %arg7: memref<2x64x128xbf16, #tpu.memory_space<vmem>>, %arg8: memref<1x64xf32, #tpu.memory_space<vmem>>, %arg9: memref<1x64xf32, #tpu.memory_space<vmem>>, %arg10: memref<1x64xf32, #tpu.memory_space<vmem>>, %arg11: memref<1x2x2xf32, #tpu.memory_space<vmem>>, %arg12: memref<1x1x5xf32, #tpu.memory_space<vmem>>) attributes {dimension_semantics = [#tpu.dimension_semantics<parallel>], iteration_bounds = array<i64: 2>, scalar_prefetch = 0 : i64, scratch_operands = 0 : i64, tpu.core_type = #tpu.core_type<tc>, window_params = [{transform_indices = @transform_0, window_bounds = array<i64: 5>}, {transform_indices = @transform_1, window_bounds = array<i64: 1, 16, 48>}, {pipeline_mode = #tpu.pipeline_mode<synchronous>, transform_indices = @transform_2, window_bounds = array<i64: 4, 48, 64>}, {pipeline_mode = #tpu.pipeline_mode<synchronous>, transform_indices = @transform_3, window_bounds = array<i64: 4, 64, 64>}, {pipeline_mode = #tpu.pipeline_mode<synchronous>, transform_indices = @transform_4, window_bounds = array<i64: 4, 64, 64>}, {pipeline_mode = #tpu.pipeline_mode<synchronous>, transform_indices = @transform_5, window_bounds = array<i64: 3, 64, 128>}, {pipeline_mode = #tpu.pipeline_mode<synchronous>, transform_indices = @transform_6, window_bounds = array<i64: 2, 64, 128>}, {pipeline_mode = #tpu.pipeline_mode<synchronous>, transform_indices = @transform_7, window_bounds = array<i64: 1, 64>}, {pipeline_mode = #tpu.pipeline_mode<synchronous>, transform_indices = @transform_8, window_bounds = array<i64: 1, 64>}, {pipeline_mode = #tpu.pipeline_mode<synchronous>, transform_indices = @transform_9, window_bounds = array<i64: 1, 64>}, {transform_indices = @transform_10, window_bounds = array<i64: 1, 2, 2>}, {transform_indices = @transform_11, window_bounds = array<i64: 1, 1, 5>}]} {
    %c0 = arith.constant 0 : index
    %c0_0 = arith.constant 0 : index
    %c0_1 = arith.constant 0 : index
    %0 = vector.load %arg2[%c0, %c0_0, %c0_1] : memref<1x16x48xf32, #tpu.memory_space<vmem>>, vector<1x16x48xf32>
    %1 = vector.shape_cast %0 : vector<1x16x48xf32> to vector<16x48xf32>
    %c0_2 = arith.constant 0 : index
    %2 = memref.load %arg1[%c0_2] : memref<5xf32, #tpu.memory_space<smem>>
    %c0_3 = arith.constant 0 : index
    %c0_4 = arith.constant 0 : index
    %3 = vector.load %arg8[%c0_3, %c0_4] : memref<1x64xf32, #tpu.memory_space<vmem>>, vector<1x64xf32>
    %cst = arith.constant 0.000000e+00 : f32
    %4 = vector.broadcast %cst : f32 to vector<8x64xf32>
    %cst_5 = arith.constant 0.000000e+00 : f32
    %5 = vector.broadcast %cst_5 : f32 to vector<1x48xf32>
    %6 = vector.extract_strided_slice %1 {offsets = [1, 0], sizes = [1, 48], strides = [1, 1]} : vector<16x48xf32> to vector<1x48xf32>
    %7 = vector.extract_strided_slice %1 {offsets = [3, 0], sizes = [1, 48], strides = [1, 1]} : vector<16x48xf32> to vector<1x48xf32>
    %8 = vector.extract_strided_slice %1 {offsets = [5, 0], sizes = [1, 48], strides = [1, 1]} : vector<16x48xf32> to vector<1x48xf32>
    %9 = vector.extract_strided_slice %1 {offsets = [7, 0], sizes = [1, 48], strides = [1, 1]} : vector<16x48xf32> to vector<1x48xf32>
    %10 = vector.extract_strided_slice %1 {offsets = [9, 0], sizes = [1, 48], strides = [1, 1]} : vector<16x48xf32> to vector<1x48xf32>
    %11 = vector.extract_strided_slice %1 {offsets = [11, 0], sizes = [1, 48], strides = [1, 1]} : vector<16x48xf32> to vector<1x48xf32>
    %12 = vector.extract_strided_slice %1 {offsets = [13, 0], sizes = [1, 48], strides = [1, 1]} : vector<16x48xf32> to vector<1x48xf32>
    %13 = tpu.concatenate %5, %6, %7, %8, %9, %10, %11, %12 in 0 : vector<1x48xf32>, vector<1x48xf32>, vector<1x48xf32>, vector<1x48xf32>, vector<1x48xf32>, vector<1x48xf32>, vector<1x48xf32>, vector<1x48xf32> -> vector<8x48xf32>
    %14 = arith.truncf %13 : vector<8x48xf32> to vector<8x48xbf16>
    %c0_6 = arith.constant 0 : index
    %c0_7 = arith.constant 0 : index
    %c0_8 = arith.constant 0 : index
    %15 = vector.load %arg3[%c0_6, %c0_7, %c0_8] : memref<4x48x64xbf16, #tpu.memory_space<vmem>>, vector<1x48x64xbf16>
    %16 = vector.shape_cast %15 : vector<1x48x64xbf16> to vector<48x64xbf16>
    %cst_9 = arith.constant dense<0.000000e+00> : vector<8x64xf32>
    %17 = tpu.matmul %14, %16, %cst_9 {dimension_numbers = #tpu.dot_dimension_numbers<[1], [0], [0], [1], [0, 0, 1, 1], [], []>} : vector<8x48xbf16>, vector<48x64xbf16>, vector<8x64xf32> -> vector<8x64xf32>
    %18 = arith.addf %4, %17 : vector<8x64xf32>
    %19 = vector.extract_strided_slice %1 {offsets = [0, 0], sizes = [1, 48], strides = [1, 1]} : vector<16x48xf32> to vector<1x48xf32>
    %20 = vector.extract_strided_slice %1 {offsets = [2, 0], sizes = [1, 48], strides = [1, 1]} : vector<16x48xf32> to vector<1x48xf32>
    %21 = vector.extract_strided_slice %1 {offsets = [4, 0], sizes = [1, 48], strides = [1, 1]} : vector<16x48xf32> to vector<1x48xf32>
    %22 = vector.extract_strided_slice %1 {offsets = [6, 0], sizes = [1, 48], strides = [1, 1]} : vector<16x48xf32> to vector<1x48xf32>
    %23 = vector.extract_strided_slice %1 {offsets = [8, 0], sizes = [1, 48], strides = [1, 1]} : vector<16x48xf32> to vector<1x48xf32>
    %24 = vector.extract_strided_slice %1 {offsets = [10, 0], sizes = [1, 48], strides = [1, 1]} : vector<16x48xf32> to vector<1x48xf32>
    %25 = vector.extract_strided_slice %1 {offsets = [12, 0], sizes = [1, 48], strides = [1, 1]} : vector<16x48xf32> to vector<1x48xf32>
    %26 = vector.extract_strided_slice %1 {offsets = [14, 0], sizes = [1, 48], strides = [1, 1]} : vector<16x48xf32> to vector<1x48xf32>
    %27 = tpu.concatenate %19, %20, %21, %22, %23, %24, %25, %26 in 0 : vector<1x48xf32>, vector<1x48xf32>, vector<1x48xf32>, vector<1x48xf32>, vector<1x48xf32>, vector<1x48xf32>, vector<1x48xf32>, vector<1x48xf32> -> vector<8x48xf32>
    %28 = arith.truncf %27 : vector<8x48xf32> to vector<8x48xbf16>
    %c1 = arith.constant 1 : index
    %c0_10 = arith.constant 0 : index
    %c0_11 = arith.constant 0 : index
    %29 = vector.load %arg3[%c1, %c0_10, %c0_11] : memref<4x48x64xbf16, #tpu.memory_space<vmem>>, vector<1x48x64xbf16>
    %30 = vector.shape_cast %29 : vector<1x48x64xbf16> to vector<48x64xbf16>
    %cst_12 = arith.constant dense<0.000000e+00> : vector<8x64xf32>
    %31 = tpu.matmul %28, %30, %cst_12 {dimension_numbers = #tpu.dot_dimension_numbers<[1], [0], [0], [1], [0, 0, 1, 1], [], []>} : vector<8x48xbf16>, vector<48x64xbf16>, vector<8x64xf32> -> vector<8x64xf32>
    %32 = arith.addf %18, %31 : vector<8x64xf32>
    %33 = vector.extract_strided_slice %1 {offsets = [1, 0], sizes = [1, 48], strides = [1, 1]} : vector<16x48xf32> to vector<1x48xf32>
    %34 = vector.extract_strided_slice %1 {offsets = [3, 0], sizes = [1, 48], strides = [1, 1]} : vector<16x48xf32> to vector<1x48xf32>
    %35 = vector.extract_strided_slice %1 {offsets = [5, 0], sizes = [1, 48], strides = [1, 1]} : vector<16x48xf32> to vector<1x48xf32>
    %36 = vector.extract_strided_slice %1 {offsets = [7, 0], sizes = [1, 48], strides = [1, 1]} : vector<16x48xf32> to vector<1x48xf32>
    %37 = vector.extract_strided_slice %1 {offsets = [9, 0], sizes = [1, 48], strides = [1, 1]} : vector<16x48xf32> to vector<1x48xf32>
    %38 = vector.extract_strided_slice %1 {offsets = [11, 0], sizes = [1, 48], strides = [1, 1]} : vector<16x48xf32> to vector<1x48xf32>
    %39 = vector.extract_strided_slice %1 {offsets = [13, 0], sizes = [1, 48], strides = [1, 1]} : vector<16x48xf32> to vector<1x48xf32>
    %40 = vector.extract_strided_slice %1 {offsets = [15, 0], sizes = [1, 48], strides = [1, 1]} : vector<16x48xf32> to vector<1x48xf32>
    %41 = tpu.concatenate %33, %34, %35, %36, %37, %38, %39, %40 in 0 : vector<1x48xf32>, vector<1x48xf32>, vector<1x48xf32>, vector<1x48xf32>, vector<1x48xf32>, vector<1x48xf32>, vector<1x48xf32>, vector<1x48xf32> -> vector<8x48xf32>
    %42 = arith.truncf %41 : vector<8x48xf32> to vector<8x48xbf16>
    %c2 = arith.constant 2 : index
    %c0_13 = arith.constant 0 : index
    %c0_14 = arith.constant 0 : index
    %43 = vector.load %arg3[%c2, %c0_13, %c0_14] : memref<4x48x64xbf16, #tpu.memory_space<vmem>>, vector<1x48x64xbf16>
    %44 = vector.shape_cast %43 : vector<1x48x64xbf16> to vector<48x64xbf16>
    %cst_15 = arith.constant dense<0.000000e+00> : vector<8x64xf32>
    %45 = tpu.matmul %42, %44, %cst_15 {dimension_numbers = #tpu.dot_dimension_numbers<[1], [0], [0], [1], [0, 0, 1, 1], [], []>} : vector<8x48xbf16>, vector<48x64xbf16>, vector<8x64xf32> -> vector<8x64xf32>
    %46 = arith.addf %32, %45 : vector<8x64xf32>
    %47 = vector.extract_strided_slice %1 {offsets = [2, 0], sizes = [1, 48], strides = [1, 1]} : vector<16x48xf32> to vector<1x48xf32>
    %48 = vector.extract_strided_slice %1 {offsets = [4, 0], sizes = [1, 48], strides = [1, 1]} : vector<16x48xf32> to vector<1x48xf32>
    %49 = vector.extract_strided_slice %1 {offsets = [6, 0], sizes = [1, 48], strides = [1, 1]} : vector<16x48xf32> to vector<1x48xf32>
    %50 = vector.extract_strided_slice %1 {offsets = [8, 0], sizes = [1, 48], strides = [1, 1]} : vector<16x48xf32> to vector<1x48xf32>
    %51 = vector.extract_strided_slice %1 {offsets = [10, 0], sizes = [1, 48], strides = [1, 1]} : vector<16x48xf32> to vector<1x48xf32>
    %52 = vector.extract_strided_slice %1 {offsets = [12, 0], sizes = [1, 48], strides = [1, 1]} : vector<16x48xf32> to vector<1x48xf32>
    %53 = vector.extract_strided_slice %1 {offsets = [14, 0], sizes = [1, 48], strides = [1, 1]} : vector<16x48xf32> to vector<1x48xf32>
    %cst_16 = arith.constant 0.000000e+00 : f32
    %54 = vector.broadcast %cst_16 : f32 to vector<1x48xf32>
    %55 = tpu.concatenate %47, %48, %49, %50, %51, %52, %53, %54 in 0 : vector<1x48xf32>, vector<1x48xf32>, vector<1x48xf32>, vector<1x48xf32>, vector<1x48xf32>, vector<1x48xf32>, vector<1x48xf32>, vector<1x48xf32> -> vector<8x48xf32>
    %56 = arith.truncf %55 : vector<8x48xf32> to vector<8x48xbf16>
    %c3 = arith.constant 3 : index
    %c0_17 = arith.constant 0 : index
    %c0_18 = arith.constant 0 : index
    %57 = vector.load %arg3[%c3, %c0_17, %c0_18] : memref<4x48x64xbf16, #tpu.memory_space<vmem>>, vector<1x48x64xbf16>
    %58 = vector.shape_cast %57 : vector<1x48x64xbf16> to vector<48x64xbf16>
    %cst_19 = arith.constant dense<0.000000e+00> : vector<8x64xf32>
    %59 = tpu.matmul %56, %58, %cst_19 {dimension_numbers = #tpu.dot_dimension_numbers<[1], [0], [0], [1], [0, 0, 1, 1], [], []>} : vector<8x48xbf16>, vector<48x64xbf16>, vector<8x64xf32> -> vector<8x64xf32>
    %60 = arith.addf %46, %59 : vector<8x64xf32>
    %61 = vector.broadcast %2 : f32 to vector<8x64xf32>
    %62 = arith.mulf %60, %61 : vector<8x64xf32>
    %63 = vector.broadcast %3 : vector<1x64xf32> to vector<8x64xf32>
    %64 = arith.addf %62, %63 : vector<8x64xf32>
    %cst_20 = arith.constant 0.000000e+00 : f32
    %65 = vector.broadcast %cst_20 : f32 to vector<8x64xf32>
    %66 = arith.cmpf oge, %64, %65 : vector<8x64xf32>
    %cst_21 = arith.constant 0.00999999977 : f32
    %67 = vector.broadcast %cst_21 : f32 to vector<8x64xf32>
    %68 = arith.mulf %67, %64 : vector<8x64xf32>
    %69 = arith.select %66, %64, %68 : vector<8x64xi1>, vector<8x64xf32>
    %c1_22 = arith.constant 1 : index
    %70 = memref.load %arg1[%c1_22] : memref<5xf32, #tpu.memory_space<smem>>
    %c0_23 = arith.constant 0 : index
    %c0_24 = arith.constant 0 : index
    %71 = vector.load %arg9[%c0_23, %c0_24] : memref<1x64xf32, #tpu.memory_space<vmem>>, vector<1x64xf32>
    %cst_25 = arith.constant 0.000000e+00 : f32
    %72 = vector.broadcast %cst_25 : f32 to vector<4x64xf32>
    %cst_26 = arith.constant 0.000000e+00 : f32
    %73 = vector.broadcast %cst_26 : f32 to vector<1x64xf32>
    %74 = vector.extract_strided_slice %69 {offsets = [1, 0], sizes = [1, 64], strides = [1, 1]} : vector<8x64xf32> to vector<1x64xf32>
    %75 = vector.extract_strided_slice %69 {offsets = [3, 0], sizes = [1, 64], strides = [1, 1]} : vector<8x64xf32> to vector<1x64xf32>
    %76 = vector.extract_strided_slice %69 {offsets = [5, 0], sizes = [1, 64], strides = [1, 1]} : vector<8x64xf32> to vector<1x64xf32>
    %77 = tpu.concatenate %73, %74, %75, %76 in 0 : vector<1x64xf32>, vector<1x64xf32>, vector<1x64xf32>, vector<1x64xf32> -> vector<4x64xf32>
    %78 = arith.truncf %77 : vector<4x64xf32> to vector<4x64xbf16>
    %c0_27 = arith.constant 0 : index
    %c0_28 = arith.constant 0 : index
    %c0_29 = arith.constant 0 : index
    %79 = vector.load %arg4[%c0_27, %c0_28, %c0_29] : memref<4x64x64xbf16, #tpu.memory_space<vmem>>, vector<1x64x64xbf16>
    %80 = vector.shape_cast %79 : vector<1x64x64xbf16> to vector<64x64xbf16>
    %cst_30 = arith.constant dense<0.000000e+00> : vector<4x64xf32>
    %81 = tpu.matmul %78, %80, %cst_30 {dimension_numbers = #tpu.dot_dimension_numbers<[1], [0], [0], [1], [0, 0, 1, 1], [], []>} : vector<4x64xbf16>, vector<64x64xbf16>, vector<4x64xf32> -> vector<4x64xf32>
    %82 = arith.addf %72, %81 : vector<4x64xf32>
    %83 = vector.extract_strided_slice %69 {offsets = [0, 0], sizes = [1, 64], strides = [1, 1]} : vector<8x64xf32> to vector<1x64xf32>
    %84 = vector.extract_strided_slice %69 {offsets = [2, 0], sizes = [1, 64], strides = [1, 1]} : vector<8x64xf32> to vector<1x64xf32>
    %85 = vector.extract_strided_slice %69 {offsets = [4, 0], sizes = [1, 64], strides = [1, 1]} : vector<8x64xf32> to vector<1x64xf32>
    %86 = vector.extract_strided_slice %69 {offsets = [6, 0], sizes = [1, 64], strides = [1, 1]} : vector<8x64xf32> to vector<1x64xf32>
    %87 = tpu.concatenate %83, %84, %85, %86 in 0 : vector<1x64xf32>, vector<1x64xf32>, vector<1x64xf32>, vector<1x64xf32> -> vector<4x64xf32>
    %88 = arith.truncf %87 : vector<4x64xf32> to vector<4x64xbf16>
    %c1_31 = arith.constant 1 : index
    %c0_32 = arith.constant 0 : index
    %c0_33 = arith.constant 0 : index
    %89 = vector.load %arg4[%c1_31, %c0_32, %c0_33] : memref<4x64x64xbf16, #tpu.memory_space<vmem>>, vector<1x64x64xbf16>
    %90 = vector.shape_cast %89 : vector<1x64x64xbf16> to vector<64x64xbf16>
    %cst_34 = arith.constant dense<0.000000e+00> : vector<4x64xf32>
    %91 = tpu.matmul %88, %90, %cst_34 {dimension_numbers = #tpu.dot_dimension_numbers<[1], [0], [0], [1], [0, 0, 1, 1], [], []>} : vector<4x64xbf16>, vector<64x64xbf16>, vector<4x64xf32> -> vector<4x64xf32>
    %92 = arith.addf %82, %91 : vector<4x64xf32>
    %93 = vector.extract_strided_slice %69 {offsets = [1, 0], sizes = [1, 64], strides = [1, 1]} : vector<8x64xf32> to vector<1x64xf32>
    %94 = vector.extract_strided_slice %69 {offsets = [3, 0], sizes = [1, 64], strides = [1, 1]} : vector<8x64xf32> to vector<1x64xf32>
    %95 = vector.extract_strided_slice %69 {offsets = [5, 0], sizes = [1, 64], strides = [1, 1]} : vector<8x64xf32> to vector<1x64xf32>
    %96 = vector.extract_strided_slice %69 {offsets = [7, 0], sizes = [1, 64], strides = [1, 1]} : vector<8x64xf32> to vector<1x64xf32>
    %97 = tpu.concatenate %93, %94, %95, %96 in 0 : vector<1x64xf32>, vector<1x64xf32>, vector<1x64xf32>, vector<1x64xf32> -> vector<4x64xf32>
    %98 = arith.truncf %97 : vector<4x64xf32> to vector<4x64xbf16>
    %c2_35 = arith.constant 2 : index
    %c0_36 = arith.constant 0 : index
    %c0_37 = arith.constant 0 : index
    %99 = vector.load %arg4[%c2_35, %c0_36, %c0_37] : memref<4x64x64xbf16, #tpu.memory_space<vmem>>, vector<1x64x64xbf16>
    %100 = vector.shape_cast %99 : vector<1x64x64xbf16> to vector<64x64xbf16>
    %cst_38 = arith.constant dense<0.000000e+00> : vector<4x64xf32>
    %101 = tpu.matmul %98, %100, %cst_38 {dimension_numbers = #tpu.dot_dimension_numbers<[1], [0], [0], [1], [0, 0, 1, 1], [], []>} : vector<4x64xbf16>, vector<64x64xbf16>, vector<4x64xf32> -> vector<4x64xf32>
    %102 = arith.addf %92, %101 : vector<4x64xf32>
    %103 = vector.extract_strided_slice %69 {offsets = [2, 0], sizes = [1, 64], strides = [1, 1]} : vector<8x64xf32> to vector<1x64xf32>
    %104 = vector.extract_strided_slice %69 {offsets = [4, 0], sizes = [1, 64], strides = [1, 1]} : vector<8x64xf32> to vector<1x64xf32>
    %105 = vector.extract_strided_slice %69 {offsets = [6, 0], sizes = [1, 64], strides = [1, 1]} : vector<8x64xf32> to vector<1x64xf32>
    %cst_39 = arith.constant 0.000000e+00 : f32
    %106 = vector.broadcast %cst_39 : f32 to vector<1x64xf32>
    %107 = tpu.concatenate %103, %104, %105, %106 in 0 : vector<1x64xf32>, vector<1x64xf32>, vector<1x64xf32>, vector<1x64xf32> -> vector<4x64xf32>
    %108 = arith.truncf %107 : vector<4x64xf32> to vector<4x64xbf16>
    %c3_40 = arith.constant 3 : index
    %c0_41 = arith.constant 0 : index
    %c0_42 = arith.constant 0 : index
    %109 = vector.load %arg4[%c3_40, %c0_41, %c0_42] : memref<4x64x64xbf16, #tpu.memory_space<vmem>>, vector<1x64x64xbf16>
    %110 = vector.shape_cast %109 : vector<1x64x64xbf16> to vector<64x64xbf16>
    %cst_43 = arith.constant dense<0.000000e+00> : vector<4x64xf32>
    %111 = tpu.matmul %108, %110, %cst_43 {dimension_numbers = #tpu.dot_dimension_numbers<[1], [0], [0], [1], [0, 0, 1, 1], [], []>} : vector<4x64xbf16>, vector<64x64xbf16>, vector<4x64xf32> -> vector<4x64xf32>
    %112 = arith.addf %102, %111 : vector<4x64xf32>
    %113 = vector.broadcast %70 : f32 to vector<4x64xf32>
    %114 = arith.mulf %112, %113 : vector<4x64xf32>
    %115 = vector.broadcast %71 : vector<1x64xf32> to vector<4x64xf32>
    %116 = arith.addf %114, %115 : vector<4x64xf32>
    %cst_44 = arith.constant 0.000000e+00 : f32
    %117 = vector.broadcast %cst_44 : f32 to vector<4x64xf32>
    %118 = arith.cmpf oge, %116, %117 : vector<4x64xf32>
    %cst_45 = arith.constant 0.00999999977 : f32
    %119 = vector.broadcast %cst_45 : f32 to vector<4x64xf32>
    %120 = arith.mulf %119, %116 : vector<4x64xf32>
    %121 = arith.select %118, %116, %120 : vector<4x64xi1>, vector<4x64xf32>
    %c2_46 = arith.constant 2 : index
    %122 = memref.load %arg1[%c2_46] : memref<5xf32, #tpu.memory_space<smem>>
    %c0_47 = arith.constant 0 : index
    %c0_48 = arith.constant 0 : index
    %123 = vector.load %arg10[%c0_47, %c0_48] : memref<1x64xf32, #tpu.memory_space<vmem>>, vector<1x64xf32>
    %cst_49 = arith.constant 0.000000e+00 : f32
    %124 = vector.broadcast %cst_49 : f32 to vector<2x64xf32>
    %cst_50 = arith.constant 0.000000e+00 : f32
    %125 = vector.broadcast %cst_50 : f32 to vector<1x64xf32>
    %126 = vector.extract_strided_slice %121 {offsets = [1, 0], sizes = [1, 64], strides = [1, 1]} : vector<4x64xf32> to vector<1x64xf32>
    %127 = tpu.concatenate %125, %126 in 0 : vector<1x64xf32>, vector<1x64xf32> -> vector<2x64xf32>
    %128 = arith.truncf %127 : vector<2x64xf32> to vector<2x64xbf16>
    %c0_51 = arith.constant 0 : index
    %c0_52 = arith.constant 0 : index
    %c0_53 = arith.constant 0 : index
    %129 = vector.load %arg5[%c0_51, %c0_52, %c0_53] : memref<4x64x64xbf16, #tpu.memory_space<vmem>>, vector<1x64x64xbf16>
    %130 = vector.shape_cast %129 : vector<1x64x64xbf16> to vector<64x64xbf16>
    %cst_54 = arith.constant dense<0.000000e+00> : vector<2x64xf32>
    %131 = tpu.matmul %128, %130, %cst_54 {dimension_numbers = #tpu.dot_dimension_numbers<[1], [0], [0], [1], [0, 0, 1, 1], [], []>} : vector<2x64xbf16>, vector<64x64xbf16>, vector<2x64xf32> -> vector<2x64xf32>
    %132 = arith.addf %124, %131 : vector<2x64xf32>
    %133 = vector.extract_strided_slice %121 {offsets = [0, 0], sizes = [1, 64], strides = [1, 1]} : vector<4x64xf32> to vector<1x64xf32>
    %134 = vector.extract_strided_slice %121 {offsets = [2, 0], sizes = [1, 64], strides = [1, 1]} : vector<4x64xf32> to vector<1x64xf32>
    %135 = tpu.concatenate %133, %134 in 0 : vector<1x64xf32>, vector<1x64xf32> -> vector<2x64xf32>
    %136 = arith.truncf %135 : vector<2x64xf32> to vector<2x64xbf16>
    %c1_55 = arith.constant 1 : index
    %c0_56 = arith.constant 0 : index
    %c0_57 = arith.constant 0 : index
    %137 = vector.load %arg5[%c1_55, %c0_56, %c0_57] : memref<4x64x64xbf16, #tpu.memory_space<vmem>>, vector<1x64x64xbf16>
    %138 = vector.shape_cast %137 : vector<1x64x64xbf16> to vector<64x64xbf16>
    %cst_58 = arith.constant dense<0.000000e+00> : vector<2x64xf32>
    %139 = tpu.matmul %136, %138, %cst_58 {dimension_numbers = #tpu.dot_dimension_numbers<[1], [0], [0], [1], [0, 0, 1, 1], [], []>} : vector<2x64xbf16>, vector<64x64xbf16>, vector<2x64xf32> -> vector<2x64xf32>
    %140 = arith.addf %132, %139 : vector<2x64xf32>
    %141 = vector.extract_strided_slice %121 {offsets = [1, 0], sizes = [1, 64], strides = [1, 1]} : vector<4x64xf32> to vector<1x64xf32>
    %142 = vector.extract_strided_slice %121 {offsets = [3, 0], sizes = [1, 64], strides = [1, 1]} : vector<4x64xf32> to vector<1x64xf32>
    %143 = tpu.concatenate %141, %142 in 0 : vector<1x64xf32>, vector<1x64xf32> -> vector<2x64xf32>
    %144 = arith.truncf %143 : vector<2x64xf32> to vector<2x64xbf16>
    %c2_59 = arith.constant 2 : index
    %c0_60 = arith.constant 0 : index
    %c0_61 = arith.constant 0 : index
    %145 = vector.load %arg5[%c2_59, %c0_60, %c0_61] : memref<4x64x64xbf16, #tpu.memory_space<vmem>>, vector<1x64x64xbf16>
    %146 = vector.shape_cast %145 : vector<1x64x64xbf16> to vector<64x64xbf16>
    %cst_62 = arith.constant dense<0.000000e+00> : vector<2x64xf32>
    %147 = tpu.matmul %144, %146, %cst_62 {dimension_numbers = #tpu.dot_dimension_numbers<[1], [0], [0], [1], [0, 0, 1, 1], [], []>} : vector<2x64xbf16>, vector<64x64xbf16>, vector<2x64xf32> -> vector<2x64xf32>
    %148 = arith.addf %140, %147 : vector<2x64xf32>
    %149 = vector.extract_strided_slice %121 {offsets = [2, 0], sizes = [1, 64], strides = [1, 1]} : vector<4x64xf32> to vector<1x64xf32>
    %cst_63 = arith.constant 0.000000e+00 : f32
    %150 = vector.broadcast %cst_63 : f32 to vector<1x64xf32>
    %151 = tpu.concatenate %149, %150 in 0 : vector<1x64xf32>, vector<1x64xf32> -> vector<2x64xf32>
    %152 = arith.truncf %151 : vector<2x64xf32> to vector<2x64xbf16>
    %c3_64 = arith.constant 3 : index
    %c0_65 = arith.constant 0 : index
    %c0_66 = arith.constant 0 : index
    %153 = vector.load %arg5[%c3_64, %c0_65, %c0_66] : memref<4x64x64xbf16, #tpu.memory_space<vmem>>, vector<1x64x64xbf16>
    %154 = vector.shape_cast %153 : vector<1x64x64xbf16> to vector<64x64xbf16>
    %cst_67 = arith.constant dense<0.000000e+00> : vector<2x64xf32>
    %155 = tpu.matmul %152, %154, %cst_67 {dimension_numbers = #tpu.dot_dimension_numbers<[1], [0], [0], [1], [0, 0, 1, 1], [], []>} : vector<2x64xbf16>, vector<64x64xbf16>, vector<2x64xf32> -> vector<2x64xf32>
    %156 = arith.addf %148, %155 : vector<2x64xf32>
    %157 = vector.broadcast %122 : f32 to vector<2x64xf32>
    %158 = arith.mulf %156, %157 : vector<2x64xf32>
    %159 = vector.broadcast %123 : vector<1x64xf32> to vector<2x64xf32>
    %160 = arith.addf %158, %159 : vector<2x64xf32>
    %cst_68 = arith.constant 0.000000e+00 : f32
    %161 = vector.broadcast %cst_68 : f32 to vector<2x64xf32>
    %162 = arith.cmpf oge, %160, %161 : vector<2x64xf32>
    %cst_69 = arith.constant 0.00999999977 : f32
    %163 = vector.broadcast %cst_69 : f32 to vector<2x64xf32>
    %164 = arith.mulf %163, %160 : vector<2x64xf32>
    %165 = arith.select %162, %160, %164 : vector<2x64xi1>, vector<2x64xf32>
    %c3_70 = arith.constant 3 : index
    %166 = memref.load %arg1[%c3_70] : memref<5xf32, #tpu.memory_space<smem>>
    %cst_71 = arith.constant 0.000000e+00 : f32
    %167 = vector.broadcast %cst_71 : f32 to vector<2x128xf32>
    %cst_72 = arith.constant 0.000000e+00 : f32
    %168 = vector.broadcast %cst_72 : f32 to vector<1x64xf32>
    %169 = vector.extract_strided_slice %165 {offsets = [0, 0], sizes = [1, 64], strides = [1, 1]} : vector<2x64xf32> to vector<1x64xf32>
    %170 = tpu.concatenate %168, %169 in 0 : vector<1x64xf32>, vector<1x64xf32> -> vector<2x64xf32>
    %171 = arith.truncf %170 : vector<2x64xf32> to vector<2x64xbf16>
    %c0_73 = arith.constant 0 : index
    %c0_74 = arith.constant 0 : index
    %c0_75 = arith.constant 0 : index
    %172 = vector.load %arg6[%c0_73, %c0_74, %c0_75] : memref<3x64x128xbf16, #tpu.memory_space<vmem>>, vector<1x64x128xbf16>
    %173 = vector.shape_cast %172 : vector<1x64x128xbf16> to vector<64x128xbf16>
    %cst_76 = arith.constant dense<0.000000e+00> : vector<2x128xf32>
    %174 = tpu.matmul %171, %173, %cst_76 {dimension_numbers = #tpu.dot_dimension_numbers<[1], [0], [0], [1], [0, 0, 1, 1], [], []>} : vector<2x64xbf16>, vector<64x128xbf16>, vector<2x128xf32> -> vector<2x128xf32>
    %175 = arith.addf %167, %174 : vector<2x128xf32>
    %176 = vector.extract_strided_slice %165 {offsets = [0, 0], sizes = [1, 64], strides = [1, 1]} : vector<2x64xf32> to vector<1x64xf32>
    %177 = vector.extract_strided_slice %165 {offsets = [1, 0], sizes = [1, 64], strides = [1, 1]} : vector<2x64xf32> to vector<1x64xf32>
    %178 = tpu.concatenate %176, %177 in 0 : vector<1x64xf32>, vector<1x64xf32> -> vector<2x64xf32>
    %179 = arith.truncf %178 : vector<2x64xf32> to vector<2x64xbf16>
    %c1_77 = arith.constant 1 : index
    %c0_78 = arith.constant 0 : index
    %c0_79 = arith.constant 0 : index
    %180 = vector.load %arg6[%c1_77, %c0_78, %c0_79] : memref<3x64x128xbf16, #tpu.memory_space<vmem>>, vector<1x64x128xbf16>
    %181 = vector.shape_cast %180 : vector<1x64x128xbf16> to vector<64x128xbf16>
    %cst_80 = arith.constant dense<0.000000e+00> : vector<2x128xf32>
    %182 = tpu.matmul %179, %181, %cst_80 {dimension_numbers = #tpu.dot_dimension_numbers<[1], [0], [0], [1], [0, 0, 1, 1], [], []>} : vector<2x64xbf16>, vector<64x128xbf16>, vector<2x128xf32> -> vector<2x128xf32>
    %183 = arith.addf %175, %182 : vector<2x128xf32>
    %184 = vector.extract_strided_slice %165 {offsets = [1, 0], sizes = [1, 64], strides = [1, 1]} : vector<2x64xf32> to vector<1x64xf32>
    %cst_81 = arith.constant 0.000000e+00 : f32
    %185 = vector.broadcast %cst_81 : f32 to vector<1x64xf32>
    %186 = tpu.concatenate %184, %185 in 0 : vector<1x64xf32>, vector<1x64xf32> -> vector<2x64xf32>
    %187 = arith.truncf %186 : vector<2x64xf32> to vector<2x64xbf16>
    %c2_82 = arith.constant 2 : index
    %c0_83 = arith.constant 0 : index
    %c0_84 = arith.constant 0 : index
    %188 = vector.load %arg6[%c2_82, %c0_83, %c0_84] : memref<3x64x128xbf16, #tpu.memory_space<vmem>>, vector<1x64x128xbf16>
    %189 = vector.shape_cast %188 : vector<1x64x128xbf16> to vector<64x128xbf16>
    %cst_85 = arith.constant dense<0.000000e+00> : vector<2x128xf32>
    %190 = tpu.matmul %187, %189, %cst_85 {dimension_numbers = #tpu.dot_dimension_numbers<[1], [0], [0], [1], [0, 0, 1, 1], [], []>} : vector<2x64xbf16>, vector<64x128xbf16>, vector<2x128xf32> -> vector<2x128xf32>
    %191 = arith.addf %183, %190 : vector<2x128xf32>
    %192 = vector.broadcast %166 : f32 to vector<2x128xf32>
    %193 = arith.mulf %191, %192 : vector<2x128xf32>
    %c4 = arith.constant 4 : index
    %194 = memref.load %arg1[%c4] : memref<5xf32, #tpu.memory_space<smem>>
    %cst_86 = arith.constant 0.000000e+00 : f32
    %195 = vector.broadcast %cst_86 : f32 to vector<1x128xf32>
    %196 = vector.extract_strided_slice %165 {offsets = [0, 0], sizes = [1, 64], strides = [1, 1]} : vector<2x64xf32> to vector<1x64xf32>
    %197 = arith.truncf %196 : vector<1x64xf32> to vector<1x64xbf16>
    %c0_87 = arith.constant 0 : index
    %c0_88 = arith.constant 0 : index
    %c0_89 = arith.constant 0 : index
    %198 = vector.load %arg7[%c0_87, %c0_88, %c0_89] : memref<2x64x128xbf16, #tpu.memory_space<vmem>>, vector<1x64x128xbf16>
    %199 = vector.shape_cast %198 : vector<1x64x128xbf16> to vector<64x128xbf16>
    %cst_90 = arith.constant dense<0.000000e+00> : vector<1x128xf32>
    %200 = tpu.matmul %197, %199, %cst_90 {dimension_numbers = #tpu.dot_dimension_numbers<[1], [0], [0], [1], [0, 0, 1, 1], [], []>} : vector<1x64xbf16>, vector<64x128xbf16>, vector<1x128xf32> -> vector<1x128xf32>
    %201 = arith.addf %195, %200 : vector<1x128xf32>
    %202 = vector.extract_strided_slice %165 {offsets = [1, 0], sizes = [1, 64], strides = [1, 1]} : vector<2x64xf32> to vector<1x64xf32>
    %203 = arith.truncf %202 : vector<1x64xf32> to vector<1x64xbf16>
    %c1_91 = arith.constant 1 : index
    %c0_92 = arith.constant 0 : index
    %c0_93 = arith.constant 0 : index
    %204 = vector.load %arg7[%c1_91, %c0_92, %c0_93] : memref<2x64x128xbf16, #tpu.memory_space<vmem>>, vector<1x64x128xbf16>
    %205 = vector.shape_cast %204 : vector<1x64x128xbf16> to vector<64x128xbf16>
    %cst_94 = arith.constant dense<0.000000e+00> : vector<1x128xf32>
    %206 = tpu.matmul %203, %205, %cst_94 {dimension_numbers = #tpu.dot_dimension_numbers<[1], [0], [0], [1], [0, 0, 1, 1], [], []>} : vector<1x64xbf16>, vector<64x128xbf16>, vector<1x128xf32> -> vector<1x128xf32>
    %207 = arith.addf %201, %206 : vector<1x128xf32>
    %208 = vector.broadcast %194 : f32 to vector<1x128xf32>
    %209 = arith.mulf %207, %208 : vector<1x128xf32>
    %210 = vector.extract_strided_slice %193 {offsets = [0, 0], sizes = [2, 2], strides = [1, 1]} : vector<2x128xf32> to vector<2x2xf32>
    %c0_95 = arith.constant 0 : index
    %c0_96 = arith.constant 0 : index
    %c0_97 = arith.constant 0 : index
    %211 = vector.load %arg11[%c0_95, %c0_96, %c0_97] : memref<1x2x2xf32, #tpu.memory_space<vmem>>, vector<1x2x2xf32>
    %212 = vector.shape_cast %211 : vector<1x2x2xf32> to vector<2x2xf32>
    %213 = vector.shape_cast %210 : vector<2x2xf32> to vector<1x2x2xf32>
    tpu.vector_store %arg11[%c0_95, %c0_96, %c0_97], %213 {strides = array<i32>} : memref<1x2x2xf32, #tpu.memory_space<vmem>>, vector<1x2x2xf32>,
    %214 = vector.extract_strided_slice %209 {offsets = [0, 0], sizes = [1, 5], strides = [1, 1]} : vector<1x128xf32> to vector<1x5xf32>
    %c0_98 = arith.constant 0 : index
    %c0_99 = arith.constant 0 : index
    %c0_100 = arith.constant 0 : index
    %215 = vector.load %arg12[%c0_98, %c0_99, %c0_100] : memref<1x1x5xf32, #tpu.memory_space<vmem>>, vector<1x1x5xf32>
    %216 = vector.shape_cast %215 : vector<1x1x5xf32> to vector<1x5xf32>
    %217 = vector.shape_cast %214 : vector<1x5xf32> to vector<1x1x5xf32>
    tpu.vector_store %arg12[%c0_98, %c0_99, %c0_100], %217 {strides = array<i32>} : memref<1x1x5xf32, #tpu.memory_space<vmem>>, vector<1x1x5xf32>,
    return
  }
  func.func @transform_0(%arg0: i32) -> i32 {
    %c0_i32 = arith.constant 0 : i32
    %c0_i32_0 = arith.constant 0 : i32
    return %c0_i32 : i32
  }
  func.func @transform_1(%arg0: i32) -> (i32, i32, i32) {
    %c0_i32 = arith.constant 0 : i32
    %c0_i32_0 = arith.constant 0 : i32
    %c0_i32_1 = arith.constant 0 : i32
    return %arg0, %c0_i32, %c0_i32_0 : i32, i32, i32
  }
  func.func @transform_2(%arg0: i32) -> (i32, i32, i32) {
    %c0_i32 = arith.constant 0 : i32
    %c0_i32_0 = arith.constant 0 : i32
    %c0_i32_1 = arith.constant 0 : i32
    %c0_i32_2 = arith.constant 0 : i32
    return %c0_i32, %c0_i32_0, %c0_i32_1 : i32, i32, i32
  }
  func.func @transform_3(%arg0: i32) -> (i32, i32, i32) {
    %c0_i32 = arith.constant 0 : i32
    %c0_i32_0 = arith.constant 0 : i32
    %c0_i32_1 = arith.constant 0 : i32
    %c0_i32_2 = arith.constant 0 : i32
    return %c0_i32, %c0_i32_0, %c0_i32_1 : i32, i32, i32
  }
  func.func @transform_4(%arg0: i32) -> (i32, i32, i32) {
    %c0_i32 = arith.constant 0 : i32
    %c0_i32_0 = arith.constant 0 : i32
    %c0_i32_1 = arith.constant 0 : i32
    %c0_i32_2 = arith.constant 0 : i32
    return %c0_i32, %c0_i32_0, %c0_i32_1 : i32, i32, i32
  }
  func.func @transform_5(%arg0: i32) -> (i32, i32, i32) {
    %c0_i32 = arith.constant 0 : i32
    %c0_i32_0 = arith.constant 0 : i32
    %c0_i32_1 = arith.constant 0 : i32
    %c0_i32_2 = arith.constant 0 : i32
    return %c0_i32, %c0_i32_0, %c0_i32_1 : i32, i32, i32
  }
  func.func @transform_6(%arg0: i32) -> (i32, i32, i32) {
    %c0_i32 = arith.constant 0 : i32
    %c0_i32_0 = arith.constant 0 : i32
    %c0_i32_1 = arith.constant 0 : i32
    %c0_i32_2 = arith.constant 0 : i32
    return %c0_i32, %c0_i32_0, %c0_i32_1 : i32, i32, i32
  }
  func.func @transform_7(%arg0: i32) -> (i32, i32) {
    %c0_i32 = arith.constant 0 : i32
    %c0_i32_0 = arith.constant 0 : i32
    %c0_i32_1 = arith.constant 0 : i32
    return %c0_i32, %c0_i32_0 : i32, i32
  }
  func.func @transform_8(%arg0: i32) -> (i32, i32) {
    %c0_i32 = arith.constant 0 : i32
    %c0_i32_0 = arith.constant 0 : i32
    %c0_i32_1 = arith.constant 0 : i32
    return %c0_i32, %c0_i32_0 : i32, i32
  }
  func.func @transform_9(%arg0: i32) -> (i32, i32) {
    %c0_i32 = arith.constant 0 : i32
    %c0_i32_0 = arith.constant 0 : i32
    %c0_i32_1 = arith.constant 0 : i32
    return %c0_i32, %c0_i32_0 : i32, i32
  }
  func.func @transform_10(%arg0: i32) -> (i32, i32, i32) {
    %c0_i32 = arith.constant 0 : i32
    %c0_i32_0 = arith.constant 0 : i32
    %c0_i32_1 = arith.constant 0 : i32
    return %arg0, %c0_i32, %c0_i32_0 : i32, i32, i32
  }
  func.func @transform_11(%arg0: i32) -> (i32, i32, i32) {
    %c0_i32 = arith.constant 0 : i32
    %c0_i32_0 = arith.constant 0 : i32
    %c0_i32_1 = arith.constant 0 : i32
    return %arg0, %c0_i32, %c0_i32_0 : i32, i32, i32
  }
}

</mosaic_0001>

<llo_original>
// kernel: _lambda_.1
$region0: #{_lambda_.1}
  #allocation0 [shape = 'u32[]', space=smem, size = 0x4, offset = 0x4, fixed_abs, tag = 'smem constant byte address 0x4 - core index']
  #allocation1 [shape = 'u32[144,128]{1,0:T(1,128)}', space=vmem, size = 0x12000, scoped, tag = 'internal scratch']
  %s0 = inlined_call_operand.vmem [shape: f32[5], index: 0, kind: input, shape index: {}]
  %s1 = inlined_call_operand.vmem [shape: f32[2,16,48], index: 1, kind: input, shape index: {}]
  %s2 = inlined_call_operand.hbm [shape: bf16[4,48,64], index: 2, kind: input, shape index: {}]
  %s3 = inlined_call_operand.vmem [shape: bf16[4,64,64], index: 3, kind: input, shape index: {}]
  %s4 = inlined_call_operand.vmem [shape: bf16[4,64,64], index: 4, kind: input, shape index: {}]
  %s5 = inlined_call_operand.hbm [shape: bf16[3,64,128], index: 5, kind: input, shape index: {}]
  %s6 = inlined_call_operand.vmem [shape: bf16[2,64,128], index: 6, kind: input, shape index: {}]
  %s7 = inlined_call_operand.vmem [shape: f32[1,64], index: 7, kind: input, shape index: {}]
  %s8 = inlined_call_operand.vmem [shape: f32[1,64], index: 8, kind: input, shape index: {}]
  %s9 = inlined_call_operand.vmem [shape: f32[1,64], index: 9, kind: input, shape index: {}]
  %s10 = inlined_call_operand.hbm [shape: f32[2,2,2], index: 10, kind: output, shape index: {0}]
  %s11 = inlined_call_operand.hbm [shape: f32[2,1,5], index: 11, kind: output, shape index: {1}]
  %12 = xla_tuple %s10, %s11
  %s13 = sld [smem:[#allocation0]]
  $region93: #{_lambda_.1} parent=0
    _
  %s15 = ssub.s32 1, %s13
  %s16 = scalar_select 0, %s15, %s13
  $region1: #{_lambda_.1} parent=0
    #allocation2 [shape = 'u8[512]{0}', space=smem, size = 0x200, scoped, tag = 'input window, operand 0, single buffered']
    #allocation3 [shape = 's32[2]{0}', space=sflag, size = 0x8, scoped, tag = 'scoped memory for _lambda_.1']
    #allocation4 [shape = 's32[2]{0}', space=sflag, size = 0x8, scoped, tag = 'scoped memory for _lambda_.1']
    #allocation5 [shape = 's32[2]{0}', space=sflag, size = 0x8, scoped, tag = 'scoped memory for _lambda_.1']
    #allocation6 [shape = 'u8[49152]{0}', space=vmem, size = 0xc000, scoped, tag = 'input window, operand 2, single buffered']
    #allocation7 [shape = 'u8[49152]{0}', space=vmem, size = 0xc000, scoped, tag = 'input window, operand 5, single buffered']
    #allocation8 [shape = 's32[1]{0}', space=sflag, size = 0x4, scoped, tag = 'scoped memory for _lambda_.1']
    #allocation9 [shape = 'u8[2048]{0}', space=vmem, size = 0x800, scoped, tag = 'output window, operand 0']
    #allocation10 [shape = 'u8[1024]{0}', space=vmem, size = 0x400, scoped, tag = 'output window, operand 1']
    #allocation11 [shape = 's32[2]{0}', space=sflag, size = 0x8, scoped, tag = 'scoped memory for _lambda_.1']
    %17 = vsyncpa [#allocation5], 0
    %18 = vsyncpa [#allocation3], 0
    %19 = vsyncpa [#allocation8], 0
    %20 = vsyncpa [#allocation4], 0
    %s21 = scalar_lea.sflag [#allocation4], 1
    %22 = vsyncpa %s21, 0
    %23 = vsyncpa [#allocation11], 0
    %s24 = scalar_lea.sflag [#allocation11], 1
    %25 = vsyncpa %s24, 0
    loop: start=0, step=1, limit=4
    $region2: #{_lambda_.1} parent=1 // loop_pre_header
      _
    $region3: #{_lambda_.1} parent=1 // loop_header
      %s27 = sphi 0, %s31
      %p28 = scmp.ge.s32.totalorder %s27, 4
      %s35 = sphi 0, %s35
      %s37 = sphi 0, %s35
      %s38 = sphi 0, %s37
      %s52 = sphi 0, %s38
      %s58 = sphi 0, %s60
      %s61 = sphi 0, %s58
      %s62 = sphi 0, %s61
      %s78 = sphi 0, %s62
      %s82 = sphi 0, %s82
      %s84 = sphi 0, %s82
      %s85 = sphi 0, %s84
      %s99 = sphi 0, %s85
      %s103 = sphi 0, %s103
      %s105 = sphi 0, %s103
      %s106 = sphi 0, %s105
      %s120 = sphi 0, %s106
      %s124 = sphi 0, %s124
      %s126 = sphi 0, %s124
      %s127 = sphi 0, %s126
      %s141 = sphi 0, %s127
      %s145 = sphi 0, %s145
      %s147 = sphi 0, %s145
      %s148 = sphi 0, %s147
      %s162 = sphi 0, %s148
      %s166 = sphi 0, %s166
      %s168 = sphi 0, %s166
      %s169 = sphi 0, %s168
      %s183 = sphi 0, %s169
      %s187 = sphi 0, %s187
      %s189 = sphi 0, %s187
      %s190 = sphi 0, %s189
      %s204 = sphi 0, %s190
      %s208 = sphi 0, %s208
      %s210 = sphi 0, %s208
      %s211 = sphi 0, %s210
      %s225 = sphi 0, %s211
      %s229 = sphi 0, %s229
      %s231 = sphi 0, %s229
      %s232 = sphi 0, %s231
      %s246 = sphi 0, %s232
      %s252 = sphi 0, %s254
      %s255 = sphi 0, %s252
      %s256 = sphi 0, %s255
      %s272 = sphi 0, %s256
      %s278 = sphi 0, %s280
      %s281 = sphi 0, %s278
      %s282 = sphi 0, %s281
      %s298 = sphi 0, %s282
    $region4: #{_lambda_.1} parent=1 // loop_header_branch
      %30 = sbr.rel (%p28) target = $region8
    $region5: #{_lambda_.1} parent=1 // loop_body
      %s32 = ssub.s32 %s27, 1
      %s33 = ssub.s32 %s27, 2
      %s34 = sadd.s32 %s27, 1
      %s36 = sadd.s32 %s35, 1
      %p39 = scmp.eq.s32.totalorder %s27, 1
      %p40 = scmp.ne.s32.totalorder %s35, %s37
      %p41 = scmp.eq.s32.totalorder %s27, 0
      %p42 = por %p40, %p41
      %p43 = scmp.ne.s32.totalorder %s35, %s37
      %p44 = scmp.eq.s32.totalorder %s32, 1
      %p45 = por %p43, %p44
      %p46 = scmp.ne.s32.totalorder %s37, %s38
      %p47 = scmp.eq.s32.totalorder %s32, 0
      %p48 = por %p46, %p47
      %p49 = scmp.ne.s32.totalorder %s37, %s38
      %p50 = scmp.eq.s32.totalorder %s33, 1
      %p51 = por %p49, %p50
      %p53 = scmp.ne.s32.totalorder %s38, %s52
      %p54 = scmp.eq.s32.totalorder %s33, 0
      %p55 = por %p53, %p54
      %s56 = ssub.s32 %s27, %s34
      %p57 = scmp.eq.s32.totalorder %s56, 0
      %s59 = sadd.s32 %s58, 1
      %s60 = scalar_select %p57, %s58, %s59
      %p63 = pneg %p57
      %p64 = scmp.eq.s32.totalorder %s27, 1
      %p65 = por %p63, %p64
      %p66 = scmp.ne.s32.totalorder %s58, %s61
      %p67 = scmp.eq.s32.totalorder %s27, 0
      %p68 = por %p66, %p67
      %p69 = scmp.ne.s32.totalorder %s58, %s61
      %p70 = scmp.eq.s32.totalorder %s32, 1
      %p71 = por %p69, %p70
      %p72 = scmp.ne.s32.totalorder %s61, %s62
      %p73 = scmp.eq.s32.totalorder %s32, 0
      %p74 = por %p72, %p73
      %p75 = scmp.ne.s32.totalorder %s61, %s62
      %p76 = scmp.eq.s32.totalorder %s33, 1
      %p77 = por %p75, %p76
      %p79 = scmp.ne.s32.totalorder %s62, %s78
      %p80 = scmp.eq.s32.totalorder %s33, 0
      %p81 = por %p79, %p80
      %s83 = sadd.s32 %s82, 1
      %p86 = scmp.eq.s32.totalorder %s27, 1
      %p87 = scmp.ne.s32.totalorder %s82, %s84
      %p88 = scmp.eq.s32.totalorder %s27, 0
      %p89 = por %p87, %p88
      %p90 = scmp.ne.s32.totalorder %s82, %s84
      %p91 = scmp.eq.s32.totalorder %s32, 1
      %p92 = por %p90, %p91
      %p93 = scmp.ne.s32.totalorder %s84, %s85
      %p94 = scmp.eq.s32.totalorder %s32, 0
      %p95 = por %p93, %p94
      %p96 = scmp.ne.s32.totalorder %s84, %s85
      %p97 = scmp.eq.s32.totalorder %s33, 1
      %p98 = por %p96, %p97
      %p100 = scmp.ne.s32.totalorder %s85, %s99
      %p101 = scmp.eq.s32.totalorder %s33, 0
      %p102 = por %p100, %p101
      %s104 = sadd.s32 %s103, 1
      %p107 = scmp.eq.s32.totalorder %s27, 1
      %p108 = scmp.ne.s32.totalorder %s103, %s105
      %p109 = scmp.eq.s32.totalorder %s27, 0
      %p110 = por %p108, %p109
      %p111 = scmp.ne.s32.totalorder %s103, %s105
      %p112 = scmp.eq.s32.totalorder %s32, 1
      %p113 = por %p111, %p112
      %p114 = scmp.ne.s32.totalorder %s105, %s106
      %p115 = scmp.eq.s32.totalorder %s32, 0
      %p116 = por %p114, %p115
      %p117 = scmp.ne.s32.totalorder %s105, %s106
      %p118 = scmp.eq.s32.totalorder %s33, 1
      %p119 = por %p117, %p118
      %p121 = scmp.ne.s32.totalorder %s106, %s120
      %p122 = scmp.eq.s32.totalorder %s33, 0
      %p123 = por %p121, %p122
      %s125 = sadd.s32 %s124, 1
      %p128 = scmp.eq.s32.totalorder %s27, 1
      %p129 = scmp.ne.s32.totalorder %s124, %s126
      %p130 = scmp.eq.s32.totalorder %s27, 0
      %p131 = por %p129, %p130
      %p132 = scmp.ne.s32.totalorder %s124, %s126
      %p133 = scmp.eq.s32.totalorder %s32, 1
      %p134 = por %p132, %p133
      %p135 = scmp.ne.s32.totalorder %s126, %s127
      %p136 = scmp.eq.s32.totalorder %s32, 0
      %p137 = por %p135, %p136
      %p138 = scmp.ne.s32.totalorder %s126, %s127
      %p139 = scmp.eq.s32.totalorder %s33, 1
      %p140 = por %p138, %p139
      %p142 = scmp.ne.s32.totalorder %s127, %s141
      %p143 = scmp.eq.s32.totalorder %s33, 0
      %p144 = por %p142, %p143
      %s146 = sadd.s32 %s145, 1
      %p149 = scmp.eq.s32.totalorder %s27, 1
      %p150 = scmp.ne.s32.totalorder %s145, %s147
      %p151 = scmp.eq.s32.totalorder %s27, 0
      %p152 = por %p150, %p151
      %p153 = scmp.ne.s32.totalorder %s145, %s147
      %p154 = scmp.eq.s32.totalorder %s32, 1
      %p155 = por %p153, %p154
      %p156 = scmp.ne.s32.totalorder %s147, %s148
      %p157 = scmp.eq.s32.totalorder %s32, 0
      %p158 = por %p156, %p157
      %p159 = scmp.ne.s32.totalorder %s147, %s148
      %p160 = scmp.eq.s32.totalorder %s33, 1
      %p161 = por %p159, %p160
      %p163 = scmp.ne.s32.totalorder %s148, %s162
      %p164 = scmp.eq.s32.totalorder %s33, 0
      %p165 = por %p163, %p164
      %s167 = sadd.s32 %s166, 1
      %p170 = scmp.eq.s32.totalorder %s27, 1
      %p171 = scmp.ne.s32.totalorder %s166, %s168
      %p172 = scmp.eq.s32.totalorder %s27, 0
      %p173 = por %p171, %p172
      %p174 = scmp.ne.s32.totalorder %s166, %s168
      %p175 = scmp.eq.s32.totalorder %s32, 1
      %p176 = por %p174, %p175
      %p177 = scmp.ne.s32.totalorder %s168, %s169
      %p178 = scmp.eq.s32.totalorder %s32, 0
      %p179 = por %p177, %p178
      %p180 = scmp.ne.s32.totalorder %s168, %s169
      %p181 = scmp.eq.s32.totalorder %s33, 1
      %p182 = por %p180, %p181
      %p184 = scmp.ne.s32.totalorder %s169, %s183
      %p185 = scmp.eq.s32.totalorder %s33, 0
      %p186 = por %p184, %p185
      %s188 = sadd.s32 %s187, 1
      %p191 = scmp.eq.s32.totalorder %s27, 1
      %p192 = scmp.ne.s32.totalorder %s187, %s189
      %p193 = scmp.eq.s32.totalorder %s27, 0
      %p194 = por %p192, %p193
      %p195 = scmp.ne.s32.totalorder %s187, %s189
      %p196 = scmp.eq.s32.totalorder %s32, 1
      %p197 = por %p195, %p196
      %p198 = scmp.ne.s32.totalorder %s189, %s190
      %p199 = scmp.eq.s32.totalorder %s32, 0
      %p200 = por %p198, %p199
      %p201 = scmp.ne.s32.totalorder %s189, %s190
      %p202 = scmp.eq.s32.totalorder %s33, 1
      %p203 = por %p201, %p202
      %p205 = scmp.ne.s32.totalorder %s190, %s204
      %p206 = scmp.eq.s32.totalorder %s33, 0
      %p207 = por %p205, %p206
      %s209 = sadd.s32 %s208, 1
      %p212 = scmp.eq.s32.totalorder %s27, 1
      %p213 = scmp.ne.s32.totalorder %s208, %s210
      %p214 = scmp.eq.s32.totalorder %s27, 0
      %p215 = por %p213, %p214
      %p216 = scmp.ne.s32.totalorder %s208, %s210
      %p217 = scmp.eq.s32.totalorder %s32, 1
      %p218 = por %p216, %p217
      %p219 = scmp.ne.s32.totalorder %s210, %s211
      %p220 = scmp.eq.s32.totalorder %s32, 0
      %p221 = por %p219, %p220
      %p222 = scmp.ne.s32.totalorder %s210, %s211
      %p223 = scmp.eq.s32.totalorder %s33, 1
      %p224 = por %p222, %p223
      %p226 = scmp.ne.s32.totalorder %s211, %s225
      %p227 = scmp.eq.s32.totalorder %s33, 0
      %p228 = por %p226, %p227
      %s230 = sadd.s32 %s229, 1
      %p233 = scmp.eq.s32.totalorder %s27, 1
      %p234 = scmp.ne.s32.totalorder %s229, %s231
      %p235 = scmp.eq.s32.totalorder %s27, 0
      %p236 = por %p234, %p235
      %p237 = scmp.ne.s32.totalorder %s229, %s231
      %p238 = scmp.eq.s32.totalorder %s32, 1
      %p239 = por %p237, %p238
      %p240 = scmp.ne.s32.totalorder %s231, %s232
      %p241 = scmp.eq.s32.totalorder %s32, 0
      %p242 = por %p240, %p241
      %p243 = scmp.ne.s32.totalorder %s231, %s232
      %p244 = scmp.eq.s32.totalorder %s33, 1
      %p245 = por %p243, %p244
      %p247 = scmp.ne.s32.totalorder %s232, %s246
      %p248 = scmp.eq.s32.totalorder %s33, 0
      %p249 = por %p247, %p248
      %s250 = ssub.s32 %s27, %s34
      %p251 = scmp.eq.s32.totalorder %s250, 0
      %s253 = sadd.s32 %s252, 1
      %s254 = scalar_select %p251, %s252, %s253
      %p257 = pneg %p251
      %p258 = scmp.eq.s32.totalorder %s27, 1
      %p259 = por %p257, %p258
      %p260 = scmp.ne.s32.totalorder %s252, %s255
      %p261 = scmp.eq.s32.totalorder %s27, 0
      %p262 = por %p260, %p261
      %p263 = scmp.ne.s32.totalorder %s252, %s255
      %p264 = scmp.eq.s32.totalorder %s32, 1
      %p265 = por %p263, %p264
      %p266 = scmp.ne.s32.totalorder %s255, %s256
      %p267 = scmp.eq.s32.totalorder %s32, 0
      %p268 = por %p266, %p267
      %p269 = scmp.ne.s32.totalorder %s255, %s256
      %p270 = scmp.eq.s32.totalorder %s33, 1
      %p271 = por %p269, %p270
      %p273 = scmp.ne.s32.totalorder %s256, %s272
      %p274 = scmp.eq.s32.totalorder %s33, 0
      %p275 = por %p273, %p274
      %s276 = ssub.s32 %s27, %s34
      %p277 = scmp.eq.s32.totalorder %s276, 0
      %s279 = sadd.s32 %s278, 1
      %s280 = scalar_select %p277, %s278, %s279
      %p283 = pneg %p277
      %p284 = scmp.eq.s32.totalorder %s27, 1
      %p285 = por %p283, %p284
      %p286 = scmp.ne.s32.totalorder %s278, %s281
      %p287 = scmp.eq.s32.totalorder %s27, 0
      %p288 = por %p286, %p287
      %p289 = scmp.ne.s32.totalorder %s278, %s281
      %p290 = scmp.eq.s32.totalorder %s32, 1
      %p291 = por %p289, %p290
      %p292 = scmp.ne.s32.totalorder %s281, %s282
      %p293 = scmp.eq.s32.totalorder %s32, 0
      %p294 = por %p292, %p293
      %p295 = scmp.ne.s32.totalorder %s281, %s282
      %p296 = scmp.eq.s32.totalorder %s33, 1
      %p297 = por %p295, %p296
      %p299 = scmp.ne.s32.totalorder %s282, %s298
      %p300 = scmp.eq.s32.totalorder %s33, 0
      %p301 = por %p299, %p300
      %p302 = scmp.le.s32.totalorder 1, %s27
      %p303 = scmp.lt.s32.totalorder %s27, 3
      %p304 = pnand %p302, %p303
      %p305 = pneg %p304
      // Predicated region
      $region9: #{_lambda_.1} parent=5 // pred_check
        _
      $region10: #{_lambda_.1} parent=5 // pred_check_branch
        %307 = sbr.rel (%p304) target = $region12
      $region11: #{_lambda_.1} parent=5 // pred_region
        %s308 = ssub.s32 %s27, 1
        // Predicated region
        $region13: #{_lambda_.1} parent=11 // pred_check
          %p309 = pneg %p48
        $region14: #{_lambda_.1} parent=11 // pred_check_branch
          %311 = sbr.rel (%p309) target = $region16
        $region15: #{_lambda_.1} parent=11 // pred_region
          %s313 = ssub.s32 16, 16
          %314 = vsyncadd [#allocation5], %s313
          %s316 = sshll.u32 %s0, 4
          %s317 = int_to_ptr.vmem [resolvable:$true] %s316
          %319 = dma.vmem_to_smem %s317, 16, [#allocation2], [#allocation5]
        $region16: #{_lambda_.1} parent=11 // pred_fallthru
          _
        // Predicated region
        $region17: #{_lambda_.1} parent=11 // pred_check
          %p320 = pneg %p95
        $region18: #{_lambda_.1} parent=11 // pred_check_branch
          %322 = sbr.rel (%p320) target = $region20
        $region19: #{_lambda_.1} parent=11 // pred_region
          %s324 = ssub.s32 1536, 1536
          %325 = vsyncadd [#allocation3], %s324
          %s326 = sshll.u32 [#allocation6], 4
          %s327 = int_to_ptr.vmem [resolvable:$true] %s326
          %332 = dma.hbm_to_vmem [thread:$0]  %s2, 1536, %s327, [#allocation3], 64, 64, 4
        $region20: #{_lambda_.1} parent=11 // pred_fallthru
          _
        // Predicated region
        $region21: #{_lambda_.1} parent=11 // pred_check
          %p333 = pneg %p116
        $region22: #{_lambda_.1} parent=11 // pred_check_branch
          %335 = sbr.rel (%p333) target = $region24
        $region23: #{_lambda_.1} parent=11 // pred_region
          _
        $region24: #{_lambda_.1} parent=11 // pred_fallthru
          _
        // Predicated region
        $region25: #{_lambda_.1} parent=11 // pred_check
          %p336 = pneg %p137
        $region26: #{_lambda_.1} parent=11 // pred_check_branch
          %338 = sbr.rel (%p336) target = $region28
        $region27: #{_lambda_.1} parent=11 // pred_region
          _
        $region28: #{_lambda_.1} parent=11 // pred_fallthru
          _
        // Predicated region
        $region29: #{_lambda_.1} parent=11 // pred_check
          %p339 = pneg %p158
        $region30: #{_lambda_.1} parent=11 // pred_check_branch
          %341 = sbr.rel (%p339) target = $region32
        $region31: #{_lambda_.1} parent=11 // pred_region
          %s343 = ssub.s32 1536, 1536
          %344 = vsyncadd [#allocation8], %s343
          %s345 = sshll.u32 [#allocation7], 4
          %s346 = int_to_ptr.vmem [resolvable:$true] %s345
          %351 = dma.hbm_to_vmem [thread:$0]  %s5, 1536, %s346, [#allocation8], 64, 64, 4
        $region32: #{_lambda_.1} parent=11 // pred_fallthru
          _
        // Predicated region
        $region33: #{_lambda_.1} parent=11 // pred_check
          %p352 = pneg %p179
        $region34: #{_lambda_.1} parent=11 // pred_check_branch
          %354 = sbr.rel (%p352) target = $region36
        $region35: #{_lambda_.1} parent=11 // pred_region
          _
        $region36: #{_lambda_.1} parent=11 // pred_fallthru
          _
        // Predicated region
        $region37: #{_lambda_.1} parent=11 // pred_check
          %p355 = pneg %p200
        $region38: #{_lambda_.1} parent=11 // pred_check_branch
          %357 = sbr.rel (%p355) target = $region40
        $region39: #{_lambda_.1} parent=11 // pred_region
          _
        $region40: #{_lambda_.1} parent=11 // pred_fallthru
          _
        // Predicated region
        $region41: #{_lambda_.1} parent=11 // pred_check
          %p358 = pneg %p221
        $region42: #{_lambda_.1} parent=11 // pred_check_branch
          %360 = sbr.rel (%p358) target = $region44
        $region43: #{_lambda_.1} parent=11 // pred_region
          _
        $region44: #{_lambda_.1} parent=11 // pred_fallthru
          _
        // Predicated region
        $region45: #{_lambda_.1} parent=11 // pred_check
          %p361 = pneg %p242
        $region46: #{_lambda_.1} parent=11 // pred_check_branch
          %363 = sbr.rel (%p361) target = $region48
        $region47: #{_lambda_.1} parent=11 // pred_region
          _
        $region48: #{_lambda_.1} parent=11 // pred_fallthru
          _
      $region12: #{_lambda_.1} parent=5 // pred_fallthru
        _
      %p364 = scmp.lt.s32.totalorder %s27, 2
      // Predicated region
      $region49: #{_lambda_.1} parent=5 // pred_check
        %p365 = pneg %p364
      $region50: #{_lambda_.1} parent=5 // pred_check_branch
        %367 = sbr.rel (%p365) target = $region52
      $region51: #{_lambda_.1} parent=5 // pred_region
        // Predicated region
        $region53: #{_lambda_.1} parent=51 // pred_check
          %p368 = pneg %p68
        $region54: #{_lambda_.1} parent=51 // pred_check_branch
          %370 = sbr.rel (%p368) target = $region56
        $region55: #{_lambda_.1} parent=51 // pred_region
          %p371 = scmp.lt.s32.totalorder %s27, 1
          %s372 = scalar_select %p371, %s27, 1
          %s373 = smul.addr %s372, 2
          %s374 = smul.addr %s373, 8
          %s375 = scalar_lea.vmem %s1, %s374
        $region56: #{_lambda_.1} parent=51 // pred_fallthru
          _
      $region52: #{_lambda_.1} parent=5 // pred_fallthru
        _
      %p376 = scmp.le.s32.totalorder 1, %s27
      %p377 = scmp.lt.s32.totalorder %s27, 3
      %p378 = pnand %p376, %p377
      %p379 = pneg %p378
      // Predicated region
      $region57: #{_lambda_.1} parent=5 // pred_check
        _
      $region58: #{_lambda_.1} parent=5 // pred_check_branch
        %381 = sbr.rel (%p378) target = $region60
      $region59: #{_lambda_.1} parent=5 // pred_region
        %s382 = ssub.s32 %s27, 1
        // Predicated region
        $region61: #{_lambda_.1} parent=59 // pred_check
          %p383 = pneg %p48
        $region62: #{_lambda_.1} parent=59 // pred_check_branch
          %385 = sbr.rel (%p383) target = $region64
        $region63: #{_lambda_.1} parent=59 // pred_region
          %386 = dma.done [#allocation5], 16
        $region64: #{_lambda_.1} parent=59 // pred_fallthru
          _
        // Predicated region
        $region65: #{_lambda_.1} parent=59 // pred_check
          %p387 = pneg %p95
        $region66: #{_lambda_.1} parent=59 // pred_check_branch
          %389 = sbr.rel (%p387) target = $region68
        $region67: #{_lambda_.1} parent=59 // pred_region
          %390 = dma.done [#allocation3], 1536
        $region68: #{_lambda_.1} parent=59 // pred_fallthru
          _
        // Predicated region
        $region69: #{_lambda_.1} parent=59 // pred_check
          %p391 = pneg %p158
        $region70: #{_lambda_.1} parent=59 // pred_check_branch
          %393 = sbr.rel (%p391) target = $region72
        $region71: #{_lambda_.1} parent=59 // pred_region
          %394 = dma.done [#allocation8], 1536
        $region72: #{_lambda_.1} parent=59 // pred_fallthru
          _
        %395 = sfence
        %p396 = pneg %p48
        %p397 = pneg %p45
        %p398 = scmp.lt.s32.totalorder %s32, 1
        %s399 = scalar_select %p398, %s32, 1
        %s400 = smul.addr %s399, 2
        %s401 = smul.addr %s400, 8
        %s402 = scalar_lea.vmem %s1, %s401
        %p403 = pneg %p74
        %p404 = pneg %p71
        %p405 = pneg %p95
        %p406 = pneg %p92
        %p407 = pneg %p116
        %p408 = pneg %p113
        %p409 = pneg %p137
        %p410 = pneg %p134
        %p411 = pneg %p158
        %p412 = pneg %p155
        %p413 = pneg %p179
        %p414 = pneg %p176
        %p415 = pneg %p200
        %p416 = pneg %p197
        %p417 = pneg %p221
        %p418 = pneg %p218
        %p419 = pneg %p242
        %p420 = pneg %p239
        %p421 = pneg %p268
        %p422 = pneg %p265
        %s423 = sand.u32 %s255, 1
        %s424 = scalar_lea.sflag [#allocation4], %s423
        %s425 = sand.u32 %s255, 1
        %s426 = smul.addr %s425, 2
        %s427 = scalar_lea.vmem [#allocation9], %s426
        %p428 = pneg %p294
        %p429 = pneg %p291
        %s430 = sand.u32 %s281, 1
        %s431 = scalar_lea.sflag [#allocation11], %s430
        %s432 = sand.u32 %s281, 1
        %s433 = scalar_lea.vmem [#allocation10], %s432
        %p434 = scmp.lt.s32.totalorder %s32, 1
        %s435 = scalar_select %p434, %s32, 1
        %s436 = smul.addr %s435, 2
        %s437 = smul.addr %s436, 8
        %s438 = scalar_lea.vmem %s1, %s437
        %v440 = vld [vmem:[%s438] sm:$0xff]
        %v441 = vld [vmem:[%s438 + $0x8] sm:$0xff]
        %s442 = sld [smem:[#allocation2]]
        %v443 = vld [vmem:[%s7] sm:$0x1]
        %v445 = vrot.slane %v440, 1
        %v447 = vrot.slane %v440, 2
        %v449 = vrot.slane %v440, 3
        %v452 = vrot.slane %v441, 4
        %v454 = vrot.slane %v441, 5
        %v456 = vrot.slane %v441, 6
        %vm458 = vcmask 1040384
        %v459 = vsel %vm458, 0.0, %v440
        %vm460 = vcmask 1041408
        %v461 = vsel %vm460, %v459, %v445
        %vm462 = vcmask 1042432
        %v463 = vsel %vm462, %v461, %v447
        %vm464 = vcmask 1043456
        %v465 = vsel %vm464, %v463, %v449
        %vm466 = vcmask 1044480
        %v467 = vsel %vm466, %v465, %v452
        %vm468 = vcmask 1045504
        %v469 = vsel %vm468, %v467, %v454
        %vm470 = vcmask 1046528
        %v471 = vsel %vm470, %v469, %v456
        %v472 = vpack.c.bf16 %v471, %v471
        %v473 = vld [vmem:[#allocation6] sm:$0xf]
        %v474 = vld [vmem:[#allocation6 + $0x4] sm:$0xf]
        %v475 = vld [vmem:[#allocation6 + $0x8] sm:$0xf]
        %v476 = vld [vmem:[#allocation6 + $0xc] sm:$0xf]
        %v477 = vld [vmem:[#allocation6 + $0x10] sm:$0xf]
        %v478 = vld [vmem:[#allocation6 + $0x14] sm:$0xf]
        %v479 = vrot.slane %v441, 7
        %v481 = vsel %vm458, %v440, %v445
        %v482 = vsel %vm460, %v481, %v447
        %v483 = vsel %vm462, %v482, %v449
        %v484 = vsel %vm464, %v483, %v452
        %v485 = vsel %vm466, %v484, %v454
        %v486 = vsel %vm468, %v485, %v456
        %v487 = vsel %vm470, %v486, %v479
        %v488 = vpack.c.bf16 %v487, %v487
        %s489 = scalar_lea.vmem [#allocation6], 24
        %v490 = vld [vmem:[%s489] sm:$0xf]
        %v491 = vld [vmem:[%s489 + $0x4] sm:$0xf]
        %v492 = vld [vmem:[%s489 + $0x8] sm:$0xf]
        %v493 = vld [vmem:[%s489 + $0xc] sm:$0xf]
        %v494 = vld [vmem:[%s489 + $0x10] sm:$0xf]
        %v495 = vld [vmem:[%s489 + $0x14] sm:$0xf]
        %v502 = vunpack.c.l.b16 %v490
        %v503 = vunpack.c.l.b16 %v491
        %v504 = vunpack.c.l.b16 %v492
        %v505 = vunpack.c.l.b16 %v493
        %v506 = vunpack.c.l.b16 %v494
        %v507 = vunpack.c.l.b16 %v495
        %v508 = vpack.c.b16 %v503, %v502
        %v509 = vpack.c.b16 %v505, %v504
        %v510 = vpack.c.b16 %v507, %v506
        %vm514 = vcmask 392192
        %v516 = vsel %vm514, %v488, 0
        %518 = vmatprep.subr.bf16.mxu0 0
        %519 = vmatpush1.bf16.msra.mxu0 0
        %520 = vmatprep.subr.bf16.mxu0 0
        %521 = vmatpush1.bf16.msra.mxu0 0
        %522 = vmatprep.subr.bf16.mxu0 0
        %523 = vmatpush1.bf16.msra.mxu0 0
        %524 = vmatprep.subr.bf16.mxu0 0
        %525 = vmatpush1.bf16.msra.mxu0 0
        %526 = vmatprep.subr.bf16.mxu0 0
        %527 = vmatpush1.bf16.msra.mxu0 0
        %528 = vmatprep.subr.bf16.mxu0 0
        %529 = vmatpush1.bf16.msra.mxu0 %v510
        %530 = vmatprep.subr.bf16.mxu0 0
        %531 = vmatpush1.bf16.msra.mxu0 %v509
        %532 = vmatprep.subr.bf16.mxu0 0
        %533 = vmatpush1.bf16.msra.mxu0 %v508
        %534 = vmatprep.subr.bf16.mxu0 0
        %535 = vmatpush2.bf16.msra.mxu0 0
        %536 = vmatprep.subr.bf16.mxu0 0
        %537 = vmatpush2.bf16.msra.mxu0 0
        %538 = vmatprep.subr.bf16.mxu0 0
        %539 = vmatpush2.bf16.msra.mxu0 0
        %540 = vmatprep.subr.bf16.mxu0 0
        %541 = vmatpush2.bf16.msra.mxu0 0
        %542 = vmatprep.subr.bf16.mxu0 0
        %543 = vmatpush2.bf16.msra.mxu0 0
        %544 = vmatprep.subr.bf16.mxu0 0
        %545 = vmatpush2.bf16.msra.mxu0 0
        %546 = vmatprep.subr.bf16.mxu0 0
        %547 = vmatpush2.bf16.msra.mxu0 0
        %548 = vmatprep.subr.bf16.mxu0 0
        %549 = vmatpush2.bf16.msra.mxu0 0
        %550 = vmatprep.mubr.bf16.mxu0 0
        %551 = vmatmul.mubr.bf16.gmra.mxu0 %v516
        %v552 = vpop.f32.mrf.mxu0
        %v553 = vadd.f32 0.0, %v552
        %v554 = vpop.f32.mrf.mxu0
        %v555 = vpop.f32.mrf.mxu0
        %v556 = vpop.f32.mrf.mxu0
        %557 = vdwg.mxu0
        %v564 = vunpack.c.l.b16 %v473
        %v565 = vunpack.c.l.b16 %v474
        %v566 = vunpack.c.l.b16 %v475
        %v567 = vunpack.c.l.b16 %v476
        %v568 = vunpack.c.l.b16 %v477
        %v569 = vunpack.c.l.b16 %v478
        %v570 = vpack.c.b16 %v565, %v564
        %v571 = vpack.c.b16 %v567, %v566
        %v572 = vpack.c.b16 %v569, %v568
        %v577 = vsel %vm514, %v472, 0
        %579 = vmatprep.subr.bf16.mxu0 0
        %580 = vmatpush1.bf16.msra.mxu0 0
        %581 = vmatprep.subr.bf16.mxu0 0
        %582 = vmatpush1.bf16.msra.mxu0 0
        %583 = vmatprep.subr.bf16.mxu0 0
        %584 = vmatpush1.bf16.msra.mxu0 0
        %585 = vmatprep.subr.bf16.mxu0 0
        %586 = vmatpush1.bf16.msra.mxu0 0
        %587 = vmatprep.subr.bf16.mxu0 0
        %588 = vmatpush1.bf16.msra.mxu0 0
        %589 = vmatprep.subr.bf16.mxu0 0
        %590 = vmatpush1.bf16.msra.mxu0 %v572
        %591 = vmatprep.subr.bf16.mxu0 0
        %592 = vmatpush1.bf16.msra.mxu0 %v571
        %593 = vmatprep.subr.bf16.mxu0 0
        %594 = vmatpush1.bf16.msra.mxu0 %v570
        %595 = vmatprep.subr.bf16.mxu0 0
        %596 = vmatpush2.bf16.msra.mxu0 0
        %597 = vmatprep.subr.bf16.mxu0 0
        %598 = vmatpush2.bf16.msra.mxu0 0
        %599 = vmatprep.subr.bf16.mxu0 0
        %600 = vmatpush2.bf16.msra.mxu0 0
        %601 = vmatprep.subr.bf16.mxu0 0
        %602 = vmatpush2.bf16.msra.mxu0 0
        %603 = vmatprep.subr.bf16.mxu0 0
        %604 = vmatpush2.bf16.msra.mxu0 0
        %605 = vmatprep.subr.bf16.mxu0 0
        %606 = vmatpush2.bf16.msra.mxu0 0
        %607 = vmatprep.subr.bf16.mxu0 0
        %608 = vmatpush2.bf16.msra.mxu0 0
        %609 = vmatprep.subr.bf16.mxu0 0
        %610 = vmatpush2.bf16.msra.mxu0 0
        %611 = vmatprep.mubr.bf16.mxu0 0
        %612 = vmatmul.mubr.bf16.gmra.mxu0 %v577
        %v613 = vpop.f32.mrf.mxu0
        %v614 = vadd.f32 %v553, %v613
        %v615 = vpop.f32.mrf.mxu0
        %v616 = vpop.f32.mrf.mxu0
        %v617 = vpop.f32.mrf.mxu0
        %618 = vdwg.mxu0
        %v619 = vrot.slane %v440, 4
        %v621 = vsel %vm458, %v445, %v447
        %v622 = vsel %vm460, %v621, %v449
        %v623 = vsel %vm462, %v622, %v619
        %v624 = vsel %vm464, %v623, %v454
        %v625 = vsel %vm466, %v624, %v456
        %v626 = vsel %vm468, %v625, %v479
        %v627 = vsel %vm470, %v626, %v441
        %v628 = vpack.c.bf16 %v627, %v627
        %s629 = scalar_lea.vmem [#allocation6], 48
        %v630 = vld [vmem:[%s629] sm:$0xf]
        %v631 = vld [vmem:[%s629 + $0x4] sm:$0xf]
        %v632 = vld [vmem:[%s629 + $0x8] sm:$0xf]
        %v633 = vld [vmem:[%s629 + $0xc] sm:$0xf]
        %v634 = vld [vmem:[%s629 + $0x10] sm:$0xf]
        %v635 = vld [vmem:[%s629 + $0x14] sm:$0xf]
        %v642 = vunpack.c.l.b16 %v630
        %v643 = vunpack.c.l.b16 %v631
        %v644 = vunpack.c.l.b16 %v632
        %v645 = vunpack.c.l.b16 %v633
        %v646 = vunpack.c.l.b16 %v634
        %v647 = vunpack.c.l.b16 %v635
        %v648 = vpack.c.b16 %v643, %v642
        %v649 = vpack.c.b16 %v645, %v644
        %v650 = vpack.c.b16 %v647, %v646
        %v655 = vsel %vm514, %v628, 0
        %657 = vmatprep.subr.bf16.mxu0 0
        %658 = vmatpush1.bf16.msra.mxu0 0
        %659 = vmatprep.subr.bf16.mxu0 0
        %660 = vmatpush1.bf16.msra.mxu0 0
        %661 = vmatprep.subr.bf16.mxu0 0
        %662 = vmatpush1.bf16.msra.mxu0 0
        %663 = vmatprep.subr.bf16.mxu0 0
        %664 = vmatpush1.bf16.msra.mxu0 0
        %665 = vmatprep.subr.bf16.mxu0 0
        %666 = vmatpush1.bf16.msra.mxu0 0
        %667 = vmatprep.subr.bf16.mxu0 0
        %668 = vmatpush1.bf16.msra.mxu0 %v650
        %669 = vmatprep.subr.bf16.mxu0 0
        %670 = vmatpush1.bf16.msra.mxu0 %v649
        %671 = vmatprep.subr.bf16.mxu0 0
        %672 = vmatpush1.bf16.msra.mxu0 %v648
        %673 = vmatprep.subr.bf16.mxu0 0
        %674 = vmatpush2.bf16.msra.mxu0 0
        %675 = vmatprep.subr.bf16.mxu0 0
        %676 = vmatpush2.bf16.msra.mxu0 0
        %677 = vmatprep.subr.bf16.mxu0 0
        %678 = vmatpush2.bf16.msra.mxu0 0
        %679 = vmatprep.subr.bf16.mxu0 0
        %680 = vmatpush2.bf16.msra.mxu0 0
        %681 = vmatprep.subr.bf16.mxu0 0
        %682 = vmatpush2.bf16.msra.mxu0 0
        %683 = vmatprep.subr.bf16.mxu0 0
        %684 = vmatpush2.bf16.msra.mxu0 0
        %685 = vmatprep.subr.bf16.mxu0 0
        %686 = vmatpush2.bf16.msra.mxu0 0
        %687 = vmatprep.subr.bf16.mxu0 0
        %688 = vmatpush2.bf16.msra.mxu0 0
        %689 = vmatprep.mubr.bf16.mxu0 0
        %690 = vmatmul.mubr.bf16.gmra.mxu0 %v655
        %v691 = vpop.f32.mrf.mxu0
        %v692 = vadd.f32 0.0, %v691
        %v693 = vpop.f32.mrf.mxu0
        %v694 = vpop.f32.mrf.mxu0
        %v695 = vpop.f32.mrf.mxu0
        %696 = vdwg.mxu0
        %v697 = vadd.f32 %v614, %v692
        %v698 = vsel %vm458, %v447, %v449
        %v699 = vsel %vm460, %v698, %v619
        %v700 = vsel %vm462, %v699, %v454
        %v701 = vsel %vm464, %v700, %v456
        %v702 = vsel %vm466, %v701, %v479
        %v703 = vsel %vm468, %v702, %v441
        %v704 = vsel %vm470, %v703, 0.0
        %v705 = vpack.c.bf16 %v704, %v704
        %s706 = scalar_lea.vmem [#allocation6], 72
        %v707 = vld [vmem:[%s706] sm:$0xf]
        %v708 = vld [vmem:[%s706 + $0x4] sm:$0xf]
        %v709 = vld [vmem:[%s706 + $0x8] sm:$0xf]
        %v710 = vld [vmem:[%s706 + $0xc] sm:$0xf]
        %v711 = vld [vmem:[%s706 + $0x10] sm:$0xf]
        %v712 = vld [vmem:[%s706 + $0x14] sm:$0xf]
        %v719 = vunpack.c.l.b16 %v707
        %v720 = vunpack.c.l.b16 %v708
        %v721 = vunpack.c.l.b16 %v709
        %v722 = vunpack.c.l.b16 %v710
        %v723 = vunpack.c.l.b16 %v711
        %v724 = vunpack.c.l.b16 %v712
        %v725 = vpack.c.b16 %v720, %v719
        %v726 = vpack.c.b16 %v722, %v721
        %v727 = vpack.c.b16 %v724, %v723
        %v732 = vsel %vm514, %v705, 0
        %734 = vmatprep.subr.bf16.mxu0 0
        %735 = vmatpush1.bf16.msra.mxu0 0
        %736 = vmatprep.subr.bf16.mxu0 0
        %737 = vmatpush1.bf16.msra.mxu0 0
        %738 = vmatprep.subr.bf16.mxu0 0
        %739 = vmatpush1.bf16.msra.mxu0 0
        %740 = vmatprep.subr.bf16.mxu0 0
        %741 = vmatpush1.bf16.msra.mxu0 0
        %742 = vmatprep.subr.bf16.mxu0 0
        %743 = vmatpush1.bf16.msra.mxu0 0
        %744 = vmatprep.subr.bf16.mxu0 0
        %745 = vmatpush1.bf16.msra.mxu0 %v727
        %746 = vmatprep.subr.bf16.mxu0 0
        %747 = vmatpush1.bf16.msra.mxu0 %v726
        %748 = vmatprep.subr.bf16.mxu0 0
        %749 = vmatpush1.bf16.msra.mxu0 %v725
        %750 = vmatprep.subr.bf16.mxu0 0
        %751 = vmatpush2.bf16.msra.mxu0 0
        %752 = vmatprep.subr.bf16.mxu0 0
        %753 = vmatpush2.bf16.msra.mxu0 0
        %754 = vmatprep.subr.bf16.mxu0 0
        %755 = vmatpush2.bf16.msra.mxu0 0
        %756 = vmatprep.subr.bf16.mxu0 0
        %757 = vmatpush2.bf16.msra.mxu0 0
        %758 = vmatprep.subr.bf16.mxu0 0
        %759 = vmatpush2.bf16.msra.mxu0 0
        %760 = vmatprep.subr.bf16.mxu0 0
        %761 = vmatpush2.bf16.msra.mxu0 0
        %762 = vmatprep.subr.bf16.mxu0 0
        %763 = vmatpush2.bf16.msra.mxu0 0
        %764 = vmatprep.subr.bf16.mxu0 0
        %765 = vmatpush2.bf16.msra.mxu0 0
        %766 = vmatprep.mubr.bf16.mxu0 0
        %767 = vmatmul.mubr.bf16.gmra.mxu0 %v732
        %v768 = vpop.f32.mrf.mxu0
        %v769 = vadd.f32 0.0, %v768
        %v770 = vpop.f32.mrf.mxu0
        %v771 = vpop.f32.mrf.mxu0
        %v772 = vpop.f32.mrf.mxu0
        %773 = vdwg.mxu0
        %v774 = vadd.f32 %v697, %v769
        %v775 = vstv %s442
        %v776 = vmul.f32 %v774, %v775
        %v778 = vlaneseq
        %v779 = vshrl.u32 %v778, 7
        %v780 = vsub.s32 0, %v779
        %v781 = vrot.slane %v443, %v780
        %v783 = vadd.f32 %v776, %v781
        %vm784 = vcmp.ge.f32.partialorder %v783, 0.0
        %v785 = vmul.f32 %v783, 0.01
        %v786 = vsel %vm784, %v783, %v785
        %s787 = sld [smem:[#allocation2 + $0x1]]
        %v788 = vld [vmem:[%s8] sm:$0x1]
        %v790 = vrot.slane %v786, 1
        %v792 = vrot.slane %v786, 2
        %v794 = vsel %vm458, 0.0, %v786
        %v795 = vsel %vm460, %v794, %v790
        %v796 = vsel %vm462, %v795, %v792
        %v797 = vpack.c.bf16 %v796, %v796
        %v798 = vld [vmem:[%s3] sm:$0xf]
        %v799 = vld [vmem:[%s3 + $0x4] sm:$0xf]
        %v800 = vld [vmem:[%s3 + $0x8] sm:$0xf]
        %v801 = vld [vmem:[%s3 + $0xc] sm:$0xf]
        %v802 = vld [vmem:[%s3 + $0x10] sm:$0xf]
        %v803 = vld [vmem:[%s3 + $0x14] sm:$0xf]
        %v804 = vld [vmem:[%s3 + $0x18] sm:$0xf]
        %v805 = vld [vmem:[%s3 + $0x1c] sm:$0xf]
        %v806 = vrot.slane %v786, 3
        %v808 = vsel %vm458, %v786, %v790
        %v809 = vsel %vm460, %v808, %v792
        %v810 = vsel %vm462, %v809, %v806
        %v811 = vpack.c.bf16 %v810, %v810
        %s812 = scalar_lea.vmem %s3, 32
        %v813 = vld [vmem:[%s812] sm:$0xf]
        %v814 = vld [vmem:[%s812 + $0x4] sm:$0xf]
        %v815 = vld [vmem:[%s812 + $0x8] sm:$0xf]
        %v816 = vld [vmem:[%s812 + $0xc] sm:$0xf]
        %v817 = vld [vmem:[%s812 + $0x10] sm:$0xf]
        %v818 = vld [vmem:[%s812 + $0x14] sm:$0xf]
        %v819 = vld [vmem:[%s812 + $0x18] sm:$0xf]
        %v820 = vld [vmem:[%s812 + $0x1c] sm:$0xf]
        %v829 = vunpack.c.l.b16 %v813
        %v830 = vunpack.c.l.b16 %v814
        %v831 = vunpack.c.l.b16 %v815
        %v832 = vunpack.c.l.b16 %v816
        %v833 = vunpack.c.l.b16 %v817
        %v834 = vunpack.c.l.b16 %v818
        %v835 = vunpack.c.l.b16 %v819
        %v836 = vunpack.c.l.b16 %v820
        %v837 = vpack.c.b16 %v830, %v829
        %v838 = vpack.c.b16 %v832, %v831
        %v839 = vpack.c.b16 %v834, %v833
        %v840 = vpack.c.b16 %v836, %v835
        %vm845 = vcmask 523264
        %v847 = vsel %vm845, %v811, 0
        %849 = vmatprep.subr.bf16.mxu0 0
        %850 = vmatpush1.bf16.msra.mxu0 0
        %851 = vmatprep.subr.bf16.mxu0 0
        %852 = vmatpush1.bf16.msra.mxu0 0
        %853 = vmatprep.subr.bf16.mxu0 0
        %854 = vmatpush1.bf16.msra.mxu0 0
        %855 = vmatprep.subr.bf16.mxu0 0
        %856 = vmatpush1.bf16.msra.mxu0 0
        %857 = vmatprep.subr.bf16.mxu0 0
        %858 = vmatpush1.bf16.msra.mxu0 %v840
        %859 = vmatprep.subr.bf16.mxu0 0
        %860 = vmatpush1.bf16.msra.mxu0 %v839
        %861 = vmatprep.subr.bf16.mxu0 0
        %862 = vmatpush1.bf16.msra.mxu0 %v838
        %863 = vmatprep.subr.bf16.mxu0 0
        %864 = vmatpush1.bf16.msra.mxu0 %v837
        %865 = vmatprep.subr.bf16.mxu0 0
        %866 = vmatpush2.bf16.msra.mxu0 0
        %867 = vmatprep.subr.bf16.mxu0 0
        %868 = vmatpush2.bf16.msra.mxu0 0
        %869 = vmatprep.subr.bf16.mxu0 0
        %870 = vmatpush2.bf16.msra.mxu0 0
        %871 = vmatprep.subr.bf16.mxu0 0
        %872 = vmatpush2.bf16.msra.mxu0 0
        %873 = vmatprep.subr.bf16.mxu0 0
        %874 = vmatpush2.bf16.msra.mxu0 0
        %875 = vmatprep.subr.bf16.mxu0 0
        %876 = vmatpush2.bf16.msra.mxu0 0
        %877 = vmatprep.subr.bf16.mxu0 0
        %878 = vmatpush2.bf16.msra.mxu0 0
        %879 = vmatprep.subr.bf16.mxu0 0
        %880 = vmatpush2.bf16.msra.mxu0 0
        %881 = vmatprep.mubr.bf16.mxu0 0
        %882 = vmatmul.mubr.bf16.gmra.mxu0 %v847
        %v883 = vpop.f32.mrf.mxu0
        %v884 = vadd.f32 0.0, %v883
        %v885 = vpop.f32.mrf.mxu0
        %v886 = vpop.f32.mrf.mxu0
        %v887 = vpop.f32.mrf.mxu0
        %888 = vdwg.mxu0
        %v897 = vunpack.c.l.b16 %v798
        %v898 = vunpack.c.l.b16 %v799
        %v899 = vunpack.c.l.b16 %v800
        %v900 = vunpack.c.l.b16 %v801
        %v901 = vunpack.c.l.b16 %v802
        %v902 = vunpack.c.l.b16 %v803
        %v903 = vunpack.c.l.b16 %v804
        %v904 = vunpack.c.l.b16 %v805
        %v905 = vpack.c.b16 %v898, %v897
        %v906 = vpack.c.b16 %v900, %v899
        %v907 = vpack.c.b16 %v902, %v901
        %v908 = vpack.c.b16 %v904, %v903
        %v914 = vsel %vm845, %v797, 0
        %916 = vmatprep.subr.bf16.mxu0 0
        %917 = vmatpush1.bf16.msra.mxu0 0
        %918 = vmatprep.subr.bf16.mxu0 0
        %919 = vmatpush1.bf16.msra.mxu0 0
        %920 = vmatprep.subr.bf16.mxu0 0
        %921 = vmatpush1.bf16.msra.mxu0 0
        %922 = vmatprep.subr.bf16.mxu0 0
        %923 = vmatpush1.bf16.msra.mxu0 0
        %924 = vmatprep.subr.bf16.mxu0 0
        %925 = vmatpush1.bf16.msra.mxu0 %v908
        %926 = vmatprep.subr.bf16.mxu0 0
        %927 = vmatpush1.bf16.msra.mxu0 %v907
        %928 = vmatprep.subr.bf16.mxu0 0
        %929 = vmatpush1.bf16.msra.mxu0 %v906
        %930 = vmatprep.subr.bf16.mxu0 0
        %931 = vmatpush1.bf16.msra.mxu0 %v905
        %932 = vmatprep.subr.bf16.mxu0 0
        %933 = vmatpush2.bf16.msra.mxu0 0
        %934 = vmatprep.subr.bf16.mxu0 0
        %935 = vmatpush2.bf16.msra.mxu0 0
        %936 = vmatprep.subr.bf16.mxu0 0
        %937 = vmatpush2.bf16.msra.mxu0 0
        %938 = vmatprep.subr.bf16.mxu0 0
        %939 = vmatpush2.bf16.msra.mxu0 0
        %940 = vmatprep.subr.bf16.mxu0 0
        %941 = vmatpush2.bf16.msra.mxu0 0
        %942 = vmatprep.subr.bf16.mxu0 0
        %943 = vmatpush2.bf16.msra.mxu0 0
        %944 = vmatprep.subr.bf16.mxu0 0
        %945 = vmatpush2.bf16.msra.mxu0 0
        %946 = vmatprep.subr.bf16.mxu0 0
        %947 = vmatpush2.bf16.msra.mxu0 0
        %948 = vmatprep.mubr.bf16.mxu0 0
        %949 = vmatmul.mubr.bf16.gmra.mxu0 %v914
        %v950 = vpop.f32.mrf.mxu0
        %v951 = vadd.f32 %v884, %v950
        %v952 = vpop.f32.mrf.mxu0
        %v953 = vpop.f32.mrf.mxu0
        %v954 = vpop.f32.mrf.mxu0
        %955 = vdwg.mxu0
        %v956 = vrot.slane %v786, 4
        %v958 = vsel %vm458, %v790, %v792
        %v959 = vsel %vm460, %v958, %v806
        %v960 = vsel %vm462, %v959, %v956
        %v961 = vpack.c.bf16 %v960, %v960
        %s962 = scalar_lea.vmem %s3, 64
        %v963 = vld [vmem:[%s962] sm:$0xf]
        %v964 = vld [vmem:[%s962 + $0x4] sm:$0xf]
        %v965 = vld [vmem:[%s962 + $0x8] sm:$0xf]
        %v966 = vld [vmem:[%s962 + $0xc] sm:$0xf]
        %v967 = vld [vmem:[%s962 + $0x10] sm:$0xf]
        %v968 = vld [vmem:[%s962 + $0x14] sm:$0xf]
        %v969 = vld [vmem:[%s962 + $0x18] sm:$0xf]
        %v970 = vld [vmem:[%s962 + $0x1c] sm:$0xf]
        %v979 = vunpack.c.l.b16 %v963
        %v980 = vunpack.c.l.b16 %v964
        %v981 = vunpack.c.l.b16 %v965
        %v982 = vunpack.c.l.b16 %v966
        %v983 = vunpack.c.l.b16 %v967
        %v984 = vunpack.c.l.b16 %v968
        %v985 = vunpack.c.l.b16 %v969
        %v986 = vunpack.c.l.b16 %v970
        %v987 = vpack.c.b16 %v980, %v979
        %v988 = vpack.c.b16 %v982, %v981
        %v989 = vpack.c.b16 %v984, %v983
        %v990 = vpack.c.b16 %v986, %v985
        %v996 = vsel %vm845, %v961, 0
        %998 = vmatprep.subr.bf16.mxu0 0
        %999 = vmatpush1.bf16.msra.mxu0 0
        %1000 = vmatprep.subr.bf16.mxu0 0
        %1001 = vmatpush1.bf16.msra.mxu0 0
        %1002 = vmatprep.subr.bf16.mxu0 0
        %1003 = vmatpush1.bf16.msra.mxu0 0
        %1004 = vmatprep.subr.bf16.mxu0 0
        %1005 = vmatpush1.bf16.msra.mxu0 0
        %1006 = vmatprep.subr.bf16.mxu0 0
        %1007 = vmatpush1.bf16.msra.mxu0 %v990
        %1008 = vmatprep.subr.bf16.mxu0 0
        %1009 = vmatpush1.bf16.msra.mxu0 %v989
        %1010 = vmatprep.subr.bf16.mxu0 0
        %1011 = vmatpush1.bf16.msra.mxu0 %v988
        %1012 = vmatprep.subr.bf16.mxu0 0
        %1013 = vmatpush1.bf16.msra.mxu0 %v987
        %1014 = vmatprep.subr.bf16.mxu0 0
        %1015 = vmatpush2.bf16.msra.mxu0 0
        %1016 = vmatprep.subr.bf16.mxu0 0
        %1017 = vmatpush2.bf16.msra.mxu0 0
        %1018 = vmatprep.subr.bf16.mxu0 0
        %1019 = vmatpush2.bf16.msra.mxu0 0
        %1020 = vmatprep.subr.bf16.mxu0 0
        %1021 = vmatpush2.bf16.msra.mxu0 0
        %1022 = vmatprep.subr.bf16.mxu0 0
        %1023 = vmatpush2.bf16.msra.mxu0 0
        %1024 = vmatprep.subr.bf16.mxu0 0
        %1025 = vmatpush2.bf16.msra.mxu0 0
        %1026 = vmatprep.subr.bf16.mxu0 0
        %1027 = vmatpush2.bf16.msra.mxu0 0
        %1028 = vmatprep.subr.bf16.mxu0 0
        %1029 = vmatpush2.bf16.msra.mxu0 0
        %1030 = vmatprep.mubr.bf16.mxu0 0
        %1031 = vmatmul.mubr.bf16.gmra.mxu0 %v996
        %v1032 = vpop.f32.mrf.mxu0
        %v1033 = vadd.f32 0.0, %v1032
        %v1034 = vpop.f32.mrf.mxu0
        %v1035 = vpop.f32.mrf.mxu0
        %v1036 = vpop.f32.mrf.mxu0
        %1037 = vdwg.mxu0
        %v1038 = vadd.f32 %v951, %v1033
        %v1039 = vsel %vm458, %v792, %v806
        %v1040 = vsel %vm460, %v1039, %v956
        %v1041 = vsel %vm462, %v1040, 0.0
        %v1042 = vpack.c.bf16 %v1041, %v1041
        %s1043 = scalar_lea.vmem %s3, 96
        %v1044 = vld [vmem:[%s1043] sm:$0xf]
        %v1045 = vld [vmem:[%s1043 + $0x4] sm:$0xf]
        %v1046 = vld [vmem:[%s1043 + $0x8] sm:$0xf]
        %v1047 = vld [vmem:[%s1043 + $0xc] sm:$0xf]
        %v1048 = vld [vmem:[%s1043 + $0x10] sm:$0xf]
        %v1049 = vld [vmem:[%s1043 + $0x14] sm:$0xf]
        %v1050 = vld [vmem:[%s1043 + $0x18] sm:$0xf]
        %v1051 = vld [vmem:[%s1043 + $0x1c] sm:$0xf]
        %v1060 = vunpack.c.l.b16 %v1044
        %v1061 = vunpack.c.l.b16 %v1045
        %v1062 = vunpack.c.l.b16 %v1046
        %v1063 = vunpack.c.l.b16 %v1047
        %v1064 = vunpack.c.l.b16 %v1048
        %v1065 = vunpack.c.l.b16 %v1049
        %v1066 = vunpack.c.l.b16 %v1050
        %v1067 = vunpack.c.l.b16 %v1051
        %v1068 = vpack.c.b16 %v1061, %v1060
        %v1069 = vpack.c.b16 %v1063, %v1062
        %v1070 = vpack.c.b16 %v1065, %v1064
        %v1071 = vpack.c.b16 %v1067, %v1066
        %v1077 = vsel %vm845, %v1042, 0
        %1079 = vmatprep.subr.bf16.mxu0 0
        %1080 = vmatpush1.bf16.msra.mxu0 0
        %1081 = vmatprep.subr.bf16.mxu0 0
        %1082 = vmatpush1.bf16.msra.mxu0 0
        %1083 = vmatprep.subr.bf16.mxu0 0
        %1084 = vmatpush1.bf16.msra.mxu0 0
        %1085 = vmatprep.subr.bf16.mxu0 0
        %1086 = vmatpush1.bf16.msra.mxu0 0
        %1087 = vmatprep.subr.bf16.mxu0 0
        %1088 = vmatpush1.bf16.msra.mxu0 %v1071
        %1089 = vmatprep.subr.bf16.mxu0 0
        %1090 = vmatpush1.bf16.msra.mxu0 %v1070
        %1091 = vmatprep.subr.bf16.mxu0 0
        %1092 = vmatpush1.bf16.msra.mxu0 %v1069
        %1093 = vmatprep.subr.bf16.mxu0 0
        %1094 = vmatpush1.bf16.msra.mxu0 %v1068
        %1095 = vmatprep.subr.bf16.mxu0 0
        %1096 = vmatpush2.bf16.msra.mxu0 0
        %1097 = vmatprep.subr.bf16.mxu0 0
        %1098 = vmatpush2.bf16.msra.mxu0 0
        %1099 = vmatprep.subr.bf16.mxu0 0
        %1100 = vmatpush2.bf16.msra.mxu0 0
        %1101 = vmatprep.subr.bf16.mxu0 0
        %1102 = vmatpush2.bf16.msra.mxu0 0
        %1103 = vmatprep.subr.bf16.mxu0 0
        %1104 = vmatpush2.bf16.msra.mxu0 0
        %1105 = vmatprep.subr.bf16.mxu0 0
        %1106 = vmatpush2.bf16.msra.mxu0 0
        %1107 = vmatprep.subr.bf16.mxu0 0
        %1108 = vmatpush2.bf16.msra.mxu0 0
        %1109 = vmatprep.subr.bf16.mxu0 0
        %1110 = vmatpush2.bf16.msra.mxu0 0
        %1111 = vmatprep.mubr.bf16.mxu0 0
        %1112 = vmatmul.mubr.bf16.gmra.mxu0 %v1077
        %v1113 = vpop.f32.mrf.mxu0
        %v1114 = vadd.f32 0.0, %v1113
        %v1115 = vpop.f32.mrf.mxu0
        %v1116 = vpop.f32.mrf.mxu0
        %v1117 = vpop.f32.mrf.mxu0
        %1118 = vdwg.mxu0
        %v1119 = vadd.f32 %v1038, %v1114
        %v1120 = vstv %s787
        %v1121 = vmul.f32 %v1119, %v1120
        %v1123 = vlaneseq
        %v1124 = vshrl.u32 %v1123, 7
        %v1125 = vsub.s32 0, %v1124
        %v1126 = vrot.slane %v788, %v1125
        %v1128 = vadd.f32 %v1121, %v1126
        %vm1129 = vcmp.ge.f32.partialorder %v1128, 0.0
        %v1130 = vmul.f32 %v1128, 0.01
        %v1131 = vsel %vm1129, %v1128, %v1130
        %s1132 = sld [smem:[#allocation2 + $0x2]]
        %v1133 = vld [vmem:[%s9] sm:$0x1]
        %v1134 = vsel %vm458, 0.0, %v1131
        %v1135 = vpack.c.bf16 %v1134, %v1134
        %v1136 = vld [vmem:[%s4] sm:$0xf]
        %v1137 = vld [vmem:[%s4 + $0x4] sm:$0xf]
        %v1138 = vld [vmem:[%s4 + $0x8] sm:$0xf]
        %v1139 = vld [vmem:[%s4 + $0xc] sm:$0xf]
        %v1140 = vld [vmem:[%s4 + $0x10] sm:$0xf]
        %v1141 = vld [vmem:[%s4 + $0x14] sm:$0xf]
        %v1142 = vld [vmem:[%s4 + $0x18] sm:$0xf]
        %v1143 = vld [vmem:[%s4 + $0x1c] sm:$0xf]
        %v1145 = vrot.slane %v1131, 1
        %v1147 = vsel %vm458, %v1131, %v1145
        %v1148 = vpack.c.bf16 %v1147, %v1147
        %s1149 = scalar_lea.vmem %s4, 32
        %v1150 = vld [vmem:[%s1149] sm:$0xf]
        %v1151 = vld [vmem:[%s1149 + $0x4] sm:$0xf]
        %v1152 = vld [vmem:[%s1149 + $0x8] sm:$0xf]
        %v1153 = vld [vmem:[%s1149 + $0xc] sm:$0xf]
        %v1154 = vld [vmem:[%s1149 + $0x10] sm:$0xf]
        %v1155 = vld [vmem:[%s1149 + $0x14] sm:$0xf]
        %v1156 = vld [vmem:[%s1149 + $0x18] sm:$0xf]
        %v1157 = vld [vmem:[%s1149 + $0x1c] sm:$0xf]
        %v1166 = vunpack.c.l.b16 %v1150
        %v1167 = vunpack.c.l.b16 %v1151
        %v1168 = vunpack.c.l.b16 %v1152
        %v1169 = vunpack.c.l.b16 %v1153
        %v1170 = vunpack.c.l.b16 %v1154
        %v1171 = vunpack.c.l.b16 %v1155
        %v1172 = vunpack.c.l.b16 %v1156
        %v1173 = vunpack.c.l.b16 %v1157
        %v1174 = vpack.c.b16 %v1167, %v1166
        %v1175 = vpack.c.b16 %v1169, %v1168
        %v1176 = vpack.c.b16 %v1171, %v1170
        %v1177 = vpack.c.b16 %v1173, %v1172
        %v1183 = vsel %vm845, %v1148, 0
        %1185 = vmatprep.subr.bf16.mxu0 0
        %1186 = vmatpush1.bf16.msra.mxu0 0
        %1187 = vmatprep.subr.bf16.mxu0 0
        %1188 = vmatpush1.bf16.msra.mxu0 0
        %1189 = vmatprep.subr.bf16.mxu0 0
        %1190 = vmatpush1.bf16.msra.mxu0 0
        %1191 = vmatprep.subr.bf16.mxu0 0
        %1192 = vmatpush1.bf16.msra.mxu0 0
        %1193 = vmatprep.subr.bf16.mxu0 0
        %1194 = vmatpush1.bf16.msra.mxu0 %v1177
        %1195 = vmatprep.subr.bf16.mxu0 0
        %1196 = vmatpush1.bf16.msra.mxu0 %v1176
        %1197 = vmatprep.subr.bf16.mxu0 0
        %1198 = vmatpush1.bf16.msra.mxu0 %v1175
        %1199 = vmatprep.subr.bf16.mxu0 0
        %1200 = vmatpush1.bf16.msra.mxu0 %v1174
        %1201 = vmatprep.subr.bf16.mxu0 0
        %1202 = vmatpush2.bf16.msra.mxu0 0
        %1203 = vmatprep.subr.bf16.mxu0 0
        %1204 = vmatpush2.bf16.msra.mxu0 0
        %1205 = vmatprep.subr.bf16.mxu0 0
        %1206 = vmatpush2.bf16.msra.mxu0 0
        %1207 = vmatprep.subr.bf16.mxu0 0
        %1208 = vmatpush2.bf16.msra.mxu0 0
        %1209 = vmatprep.subr.bf16.mxu0 0
        %1210 = vmatpush2.bf16.msra.mxu0 0
        %1211 = vmatprep.subr.bf16.mxu0 0
        %1212 = vmatpush2.bf16.msra.mxu0 0
        %1213 = vmatprep.subr.bf16.mxu0 0
        %1214 = vmatpush2.bf16.msra.mxu0 0
        %1215 = vmatprep.subr.bf16.mxu0 0
        %1216 = vmatpush2.bf16.msra.mxu0 0
        %1217 = vmatprep.mubr.bf16.mxu0 0
        %1218 = vmatmul.mubr.bf16.gmra.mxu0 %v1183
        %v1219 = vpop.f32.mrf.mxu0
        %v1220 = vadd.f32 0.0, %v1219
        %v1221 = vpop.f32.mrf.mxu0
        %v1222 = vpop.f32.mrf.mxu0
        %v1223 = vpop.f32.mrf.mxu0
        %1224 = vdwg.mxu0
        %v1233 = vunpack.c.l.b16 %v1136
        %v1234 = vunpack.c.l.b16 %v1137
        %v1235 = vunpack.c.l.b16 %v1138
        %v1236 = vunpack.c.l.b16 %v1139
        %v1237 = vunpack.c.l.b16 %v1140
        %v1238 = vunpack.c.l.b16 %v1141
        %v1239 = vunpack.c.l.b16 %v1142
        %v1240 = vunpack.c.l.b16 %v1143
        %v1241 = vpack.c.b16 %v1234, %v1233
        %v1242 = vpack.c.b16 %v1236, %v1235
        %v1243 = vpack.c.b16 %v1238, %v1237
        %v1244 = vpack.c.b16 %v1240, %v1239
        %v1250 = vsel %vm845, %v1135, 0
        %1252 = vmatprep.subr.bf16.mxu0 0
        %1253 = vmatpush1.bf16.msra.mxu0 0
        %1254 = vmatprep.subr.bf16.mxu0 0
        %1255 = vmatpush1.bf16.msra.mxu0 0
        %1256 = vmatprep.subr.bf16.mxu0 0
        %1257 = vmatpush1.bf16.msra.mxu0 0
        %1258 = vmatprep.subr.bf16.mxu0 0
        %1259 = vmatpush1.bf16.msra.mxu0 0
        %1260 = vmatprep.subr.bf16.mxu0 0
        %1261 = vmatpush1.bf16.msra.mxu0 %v1244
        %1262 = vmatprep.subr.bf16.mxu0 0
        %1263 = vmatpush1.bf16.msra.mxu0 %v1243
        %1264 = vmatprep.subr.bf16.mxu0 0
        %1265 = vmatpush1.bf16.msra.mxu0 %v1242
        %1266 = vmatprep.subr.bf16.mxu0 0
        %1267 = vmatpush1.bf16.msra.mxu0 %v1241
        %1268 = vmatprep.subr.bf16.mxu0 0
        %1269 = vmatpush2.bf16.msra.mxu0 0
        %1270 = vmatprep.subr.bf16.mxu0 0
        %1271 = vmatpush2.bf16.msra.mxu0 0
        %1272 = vmatprep.subr.bf16.mxu0 0
        %1273 = vmatpush2.bf16.msra.mxu0 0
        %1274 = vmatprep.subr.bf16.mxu0 0
        %1275 = vmatpush2.bf16.msra.mxu0 0
        %1276 = vmatprep.subr.bf16.mxu0 0
        %1277 = vmatpush2.bf16.msra.mxu0 0
        %1278 = vmatprep.subr.bf16.mxu0 0
        %1279 = vmatpush2.bf16.msra.mxu0 0
        %1280 = vmatprep.subr.bf16.mxu0 0
        %1281 = vmatpush2.bf16.msra.mxu0 0
        %1282 = vmatprep.subr.bf16.mxu0 0
        %1283 = vmatpush2.bf16.msra.mxu0 0
        %1284 = vmatprep.mubr.bf16.mxu0 0
        %1285 = vmatmul.mubr.bf16.gmra.mxu0 %v1250
        %v1286 = vpop.f32.mrf.mxu0
        %v1287 = vadd.f32 %v1220, %v1286
        %v1288 = vpop.f32.mrf.mxu0
        %v1289 = vpop.f32.mrf.mxu0
        %v1290 = vpop.f32.mrf.mxu0
        %1291 = vdwg.mxu0
        %v1292 = vrot.slane %v1131, 2
        %v1294 = vsel %vm458, %v1145, %v1292
        %v1295 = vpack.c.bf16 %v1294, %v1294
        %s1296 = scalar_lea.vmem %s4, 64
        %v1297 = vld [vmem:[%s1296] sm:$0xf]
        %v1298 = vld [vmem:[%s1296 + $0x4] sm:$0xf]
        %v1299 = vld [vmem:[%s1296 + $0x8] sm:$0xf]
        %v1300 = vld [vmem:[%s1296 + $0xc] sm:$0xf]
        %v1301 = vld [vmem:[%s1296 + $0x10] sm:$0xf]
        %v1302 = vld [vmem:[%s1296 + $0x14] sm:$0xf]
        %v1303 = vld [vmem:[%s1296 + $0x18] sm:$0xf]
        %v1304 = vld [vmem:[%s1296 + $0x1c] sm:$0xf]
        %v1313 = vunpack.c.l.b16 %v1297
        %v1314 = vunpack.c.l.b16 %v1298
        %v1315 = vunpack.c.l.b16 %v1299
        %v1316 = vunpack.c.l.b16 %v1300
        %v1317 = vunpack.c.l.b16 %v1301
        %v1318 = vunpack.c.l.b16 %v1302
        %v1319 = vunpack.c.l.b16 %v1303
        %v1320 = vunpack.c.l.b16 %v1304
        %v1321 = vpack.c.b16 %v1314, %v1313
        %v1322 = vpack.c.b16 %v1316, %v1315
        %v1323 = vpack.c.b16 %v1318, %v1317
        %v1324 = vpack.c.b16 %v1320, %v1319
        %v1330 = vsel %vm845, %v1295, 0
        %1332 = vmatprep.subr.bf16.mxu0 0
        %1333 = vmatpush1.bf16.msra.mxu0 0
        %1334 = vmatprep.subr.bf16.mxu0 0
        %1335 = vmatpush1.bf16.msra.mxu0 0
        %1336 = vmatprep.subr.bf16.mxu0 0
        %1337 = vmatpush1.bf16.msra.mxu0 0
        %1338 = vmatprep.subr.bf16.mxu0 0
        %1339 = vmatpush1.bf16.msra.mxu0 0
        %1340 = vmatprep.subr.bf16.mxu0 0
        %1341 = vmatpush1.bf16.msra.mxu0 %v1324
        %1342 = vmatprep.subr.bf16.mxu0 0
        %1343 = vmatpush1.bf16.msra.mxu0 %v1323
        %1344 = vmatprep.subr.bf16.mxu0 0
        %1345 = vmatpush1.bf16.msra.mxu0 %v1322
        %1346 = vmatprep.subr.bf16.mxu0 0
        %1347 = vmatpush1.bf16.msra.mxu0 %v1321
        %1348 = vmatprep.subr.bf16.mxu0 0
        %1349 = vmatpush2.bf16.msra.mxu0 0
        %1350 = vmatprep.subr.bf16.mxu0 0
        %1351 = vmatpush2.bf16.msra.mxu0 0
        %1352 = vmatprep.subr.bf16.mxu0 0
        %1353 = vmatpush2.bf16.msra.mxu0 0
        %1354 = vmatprep.subr.bf16.mxu0 0
        %1355 = vmatpush2.bf16.msra.mxu0 0
        %1356 = vmatprep.subr.bf16.mxu0 0
        %1357 = vmatpush2.bf16.msra.mxu0 0
        %1358 = vmatprep.subr.bf16.mxu0 0
        %1359 = vmatpush2.bf16.msra.mxu0 0
        %1360 = vmatprep.subr.bf16.mxu0 0
        %1361 = vmatpush2.bf16.msra.mxu0 0
        %1362 = vmatprep.subr.bf16.mxu0 0
        %1363 = vmatpush2.bf16.msra.mxu0 0
        %1364 = vmatprep.mubr.bf16.mxu0 0
        %1365 = vmatmul.mubr.bf16.gmra.mxu0 %v1330
        %v1366 = vpop.f32.mrf.mxu0
        %v1367 = vadd.f32 0.0, %v1366
        %v1368 = vpop.f32.mrf.mxu0
        %v1369 = vpop.f32.mrf.mxu0
        %v1370 = vpop.f32.mrf.mxu0
        %1371 = vdwg.mxu0
        %v1372 = vadd.f32 %v1287, %v1367
        %v1373 = vsel %vm458, %v1292, 0.0
        %v1374 = vpack.c.bf16 %v1373, %v1373
        %s1375 = scalar_lea.vmem %s4, 96
        %v1376 = vld [vmem:[%s1375] sm:$0xf]
        %v1377 = vld [vmem:[%s1375 + $0x4] sm:$0xf]
        %v1378 = vld [vmem:[%s1375 + $0x8] sm:$0xf]
        %v1379 = vld [vmem:[%s1375 + $0xc] sm:$0xf]
        %v1380 = vld [vmem:[%s1375 + $0x10] sm:$0xf]
        %v1381 = vld [vmem:[%s1375 + $0x14] sm:$0xf]
        %v1382 = vld [vmem:[%s1375 + $0x18] sm:$0xf]
        %v1383 = vld [vmem:[%s1375 + $0x1c] sm:$0xf]
        %v1392 = vunpack.c.l.b16 %v1376
        %v1393 = vunpack.c.l.b16 %v1377
        %v1394 = vunpack.c.l.b16 %v1378
        %v1395 = vunpack.c.l.b16 %v1379
        %v1396 = vunpack.c.l.b16 %v1380
        %v1397 = vunpack.c.l.b16 %v1381
        %v1398 = vunpack.c.l.b16 %v1382
        %v1399 = vunpack.c.l.b16 %v1383
        %v1400 = vpack.c.b16 %v1393, %v1392
        %v1401 = vpack.c.b16 %v1395, %v1394
        %v1402 = vpack.c.b16 %v1397, %v1396
        %v1403 = vpack.c.b16 %v1399, %v1398
        %v1409 = vsel %vm845, %v1374, 0
        %1411 = vmatprep.subr.bf16.mxu0 0
        %1412 = vmatpush1.bf16.msra.mxu0 0
        %1413 = vmatprep.subr.bf16.mxu0 0
        %1414 = vmatpush1.bf16.msra.mxu0 0
        %1415 = vmatprep.subr.bf16.mxu0 0
        %1416 = vmatpush1.bf16.msra.mxu0 0
        %1417 = vmatprep.subr.bf16.mxu0 0
        %1418 = vmatpush1.bf16.msra.mxu0 0
        %1419 = vmatprep.subr.bf16.mxu0 0
        %1420 = vmatpush1.bf16.msra.mxu0 %v1403
        %1421 = vmatprep.subr.bf16.mxu0 0
        %1422 = vmatpush1.bf16.msra.mxu0 %v1402
        %1423 = vmatprep.subr.bf16.mxu0 0
        %1424 = vmatpush1.bf16.msra.mxu0 %v1401
        %1425 = vmatprep.subr.bf16.mxu0 0
        %1426 = vmatpush1.bf16.msra.mxu0 %v1400
        %1427 = vmatprep.subr.bf16.mxu0 0
        %1428 = vmatpush2.bf16.msra.mxu0 0
        %1429 = vmatprep.subr.bf16.mxu0 0
        %1430 = vmatpush2.bf16.msra.mxu0 0
        %1431 = vmatprep.subr.bf16.mxu0 0
        %1432 = vmatpush2.bf16.msra.mxu0 0
        %1433 = vmatprep.subr.bf16.mxu0 0
        %1434 = vmatpush2.bf16.msra.mxu0 0
        %1435 = vmatprep.subr.bf16.mxu0 0
        %1436 = vmatpush2.bf16.msra.mxu0 0
        %1437 = vmatprep.subr.bf16.mxu0 0
        %1438 = vmatpush2.bf16.msra.mxu0 0
        %1439 = vmatprep.subr.bf16.mxu0 0
        %1440 = vmatpush2.bf16.msra.mxu0 0
        %1441 = vmatprep.subr.bf16.mxu0 0
        %1442 = vmatpush2.bf16.msra.mxu0 0
        %1443 = vmatprep.mubr.bf16.mxu0 0
        %1444 = vmatmul.mubr.bf16.gmra.mxu0 %v1409
        %v1445 = vpop.f32.mrf.mxu0
        %v1446 = vadd.f32 0.0, %v1445
        %v1447 = vpop.f32.mrf.mxu0
        %v1448 = vpop.f32.mrf.mxu0
        %v1449 = vpop.f32.mrf.mxu0
        %1450 = vdwg.mxu0
        %v1451 = vadd.f32 %v1372, %v1446
        %v1452 = vstv %s1132
        %v1453 = vmul.f32 %v1451, %v1452
        %v1455 = vlaneseq
        %v1456 = vshrl.u32 %v1455, 7
        %v1457 = vsub.s32 0, %v1456
        %v1458 = vrot.slane %v1133, %v1457
        %v1460 = vadd.f32 %v1453, %v1458
        %vm1461 = vcmp.ge.f32.partialorder %v1460, 0.0
        %v1462 = vmul.f32 %v1460, 0.01
        %v1463 = vsel %vm1461, %v1460, %v1462
        %s1464 = sld [smem:[#allocation2 + $0x3]]
        %v1466 = vrot.slane %v1463, 7
        %v1468 = vsel %vm458, 0.0, %v1466
        %v1469 = vpack.c.bf16 %v1468, %v1468
        %v1470 = vld [vmem:[#allocation7] sm:$0xf]
        %v1471 = vld [vmem:[#allocation7 + $0x4] sm:$0xf]
        %v1472 = vld [vmem:[#allocation7 + $0x8] sm:$0xf]
        %v1473 = vld [vmem:[#allocation7 + $0xc] sm:$0xf]
        %v1474 = vld [vmem:[#allocation7 + $0x10] sm:$0xf]
        %v1475 = vld [vmem:[#allocation7 + $0x14] sm:$0xf]
        %v1476 = vld [vmem:[#allocation7 + $0x18] sm:$0xf]
        %v1477 = vld [vmem:[#allocation7 + $0x1c] sm:$0xf]
        %v1478 = vpack.c.bf16 %v1463, %v1463
        %s1479 = scalar_lea.vmem [#allocation7], 32
        %v1480 = vld [vmem:[%s1479] sm:$0xf]
        %v1481 = vld [vmem:[%s1479 + $0x4] sm:$0xf]
        %v1482 = vld [vmem:[%s1479 + $0x8] sm:$0xf]
        %v1483 = vld [vmem:[%s1479 + $0xc] sm:$0xf]
        %v1484 = vld [vmem:[%s1479 + $0x10] sm:$0xf]
        %v1485 = vld [vmem:[%s1479 + $0x14] sm:$0xf]
        %v1486 = vld [vmem:[%s1479 + $0x18] sm:$0xf]
        %v1487 = vld [vmem:[%s1479 + $0x1c] sm:$0xf]
        %v1496 = vunpack.c.l.b16 %v1480
        %v1497 = vunpack.c.l.b16 %v1481
        %v1498 = vunpack.c.l.b16 %v1482
        %v1499 = vunpack.c.l.b16 %v1483
        %v1500 = vunpack.c.l.b16 %v1484
        %v1501 = vunpack.c.l.b16 %v1485
        %v1502 = vunpack.c.l.b16 %v1486
        %v1503 = vunpack.c.l.b16 %v1487
        %v1504 = vpack.c.b16 %v1497, %v1496
        %v1505 = vpack.c.b16 %v1499, %v1498
        %v1506 = vpack.c.b16 %v1501, %v1500
        %v1507 = vpack.c.b16 %v1503, %v1502
        %v1513 = vsel %vm845, %v1478, 0
        %1515 = vmatprep.subr.bf16.mxu0 0
        %1516 = vmatpush1.bf16.msra.mxu0 0
        %1517 = vmatprep.subr.bf16.mxu0 0
        %1518 = vmatpush1.bf16.msra.mxu0 0
        %1519 = vmatprep.subr.bf16.mxu0 0
        %1520 = vmatpush1.bf16.msra.mxu0 0
        %1521 = vmatprep.subr.bf16.mxu0 0
        %1522 = vmatpush1.bf16.msra.mxu0 0
        %1523 = vmatprep.subr.bf16.mxu0 0
        %1524 = vmatpush1.bf16.msra.mxu0 %v1507
        %1525 = vmatprep.subr.bf16.mxu0 0
        %1526 = vmatpush1.bf16.msra.mxu0 %v1506
        %1527 = vmatprep.subr.bf16.mxu0 0
        %1528 = vmatpush1.bf16.msra.mxu0 %v1505
        %1529 = vmatprep.subr.bf16.mxu0 0
        %1530 = vmatpush1.bf16.msra.mxu0 %v1504
        %1531 = vmatprep.subr.bf16.mxu0 0
        %1532 = vmatpush2.bf16.msra.mxu0 0
        %1533 = vmatprep.subr.bf16.mxu0 0
        %1534 = vmatpush2.bf16.msra.mxu0 0
        %1535 = vmatprep.subr.bf16.mxu0 0
        %1536 = vmatpush2.bf16.msra.mxu0 0
        %1537 = vmatprep.subr.bf16.mxu0 0
        %1538 = vmatpush2.bf16.msra.mxu0 0
        %1539 = vmatprep.subr.bf16.mxu0 0
        %1540 = vmatpush2.bf16.msra.mxu0 0
        %1541 = vmatprep.subr.bf16.mxu0 0
        %1542 = vmatpush2.bf16.msra.mxu0 0
        %1543 = vmatprep.subr.bf16.mxu0 0
        %1544 = vmatpush2.bf16.msra.mxu0 0
        %1545 = vmatprep.subr.bf16.mxu0 0
        %1546 = vmatpush2.bf16.msra.mxu0 0
        %1547 = vmatprep.mubr.bf16.mxu0 0
        %1548 = vmatmul.mubr.bf16.gmra.mxu0 %v1513
        %v1549 = vpop.f32.mrf.mxu0
        %v1550 = vadd.f32 0.0, %v1549
        %v1551 = vpop.f32.mrf.mxu0
        %v1552 = vpop.f32.mrf.mxu0
        %v1553 = vpop.f32.mrf.mxu0
        %1554 = vdwg.mxu0
        %v1563 = vunpack.c.l.b16 %v1470
        %v1564 = vunpack.c.l.b16 %v1471
        %v1565 = vunpack.c.l.b16 %v1472
        %v1566 = vunpack.c.l.b16 %v1473
        %v1567 = vunpack.c.l.b16 %v1474
        %v1568 = vunpack.c.l.b16 %v1475
        %v1569 = vunpack.c.l.b16 %v1476
        %v1570 = vunpack.c.l.b16 %v1477
        %v1571 = vpack.c.b16 %v1564, %v1563
        %v1572 = vpack.c.b16 %v1566, %v1565
        %v1573 = vpack.c.b16 %v1568, %v1567
        %v1574 = vpack.c.b16 %v1570, %v1569
        %v1580 = vsel %vm845, %v1469, 0
        %1582 = vmatprep.subr.bf16.mxu0 0
        %1583 = vmatpush1.bf16.msra.mxu0 0
        %1584 = vmatprep.subr.bf16.mxu0 0
        %1585 = vmatpush1.bf16.msra.mxu0 0
        %1586 = vmatprep.subr.bf16.mxu0 0
        %1587 = vmatpush1.bf16.msra.mxu0 0
        %1588 = vmatprep.subr.bf16.mxu0 0
        %1589 = vmatpush1.bf16.msra.mxu0 0
        %1590 = vmatprep.subr.bf16.mxu0 0
        %1591 = vmatpush1.bf16.msra.mxu0 %v1574
        %1592 = vmatprep.subr.bf16.mxu0 0
        %1593 = vmatpush1.bf16.msra.mxu0 %v1573
        %1594 = vmatprep.subr.bf16.mxu0 0
        %1595 = vmatpush1.bf16.msra.mxu0 %v1572
        %1596 = vmatprep.subr.bf16.mxu0 0
        %1597 = vmatpush1.bf16.msra.mxu0 %v1571
        %1598 = vmatprep.subr.bf16.mxu0 0
        %1599 = vmatpush2.bf16.msra.mxu0 0
        %1600 = vmatprep.subr.bf16.mxu0 0
        %1601 = vmatpush2.bf16.msra.mxu0 0
        %1602 = vmatprep.subr.bf16.mxu0 0
        %1603 = vmatpush2.bf16.msra.mxu0 0
        %1604 = vmatprep.subr.bf16.mxu0 0
        %1605 = vmatpush2.bf16.msra.mxu0 0
        %1606 = vmatprep.subr.bf16.mxu0 0
        %1607 = vmatpush2.bf16.msra.mxu0 0
        %1608 = vmatprep.subr.bf16.mxu0 0
        %1609 = vmatpush2.bf16.msra.mxu0 0
        %1610 = vmatprep.subr.bf16.mxu0 0
        %1611 = vmatpush2.bf16.msra.mxu0 0
        %1612 = vmatprep.subr.bf16.mxu0 0
        %1613 = vmatpush2.bf16.msra.mxu0 0
        %1614 = vmatprep.mubr.bf16.mxu0 0
        %1615 = vmatmul.mubr.bf16.gmra.mxu0 %v1580
        %v1616 = vpop.f32.mrf.mxu0
        %v1617 = vadd.f32 %v1550, %v1616
        %v1618 = vpop.f32.mrf.mxu0
        %v1619 = vpop.f32.mrf.mxu0
        %v1620 = vpop.f32.mrf.mxu0
        %1621 = vdwg.mxu0
        %v1622 = vrot.slane %v1463, 1
        %v1624 = vsel %vm458, %v1622, 0.0
        %v1625 = vpack.c.bf16 %v1624, %v1624
        %s1626 = scalar_lea.vmem [#allocation7], 64
        %v1627 = vld [vmem:[%s1626] sm:$0xf]
        %v1628 = vld [vmem:[%s1626 + $0x4] sm:$0xf]
        %v1629 = vld [vmem:[%s1626 + $0x8] sm:$0xf]
        %v1630 = vld [vmem:[%s1626 + $0xc] sm:$0xf]
        %v1631 = vld [vmem:[%s1626 + $0x10] sm:$0xf]
        %v1632 = vld [vmem:[%s1626 + $0x14] sm:$0xf]
        %v1633 = vld [vmem:[%s1626 + $0x18] sm:$0xf]
        %v1634 = vld [vmem:[%s1626 + $0x1c] sm:$0xf]
        %v1643 = vunpack.c.l.b16 %v1627
        %v1644 = vunpack.c.l.b16 %v1628
        %v1645 = vunpack.c.l.b16 %v1629
        %v1646 = vunpack.c.l.b16 %v1630
        %v1647 = vunpack.c.l.b16 %v1631
        %v1648 = vunpack.c.l.b16 %v1632
        %v1649 = vunpack.c.l.b16 %v1633
        %v1650 = vunpack.c.l.b16 %v1634
        %v1651 = vpack.c.b16 %v1644, %v1643
        %v1652 = vpack.c.b16 %v1646, %v1645
        %v1653 = vpack.c.b16 %v1648, %v1647
        %v1654 = vpack.c.b16 %v1650, %v1649
        %v1660 = vsel %vm845, %v1625, 0
        %1662 = vmatprep.subr.bf16.mxu0 0
        %1663 = vmatpush1.bf16.msra.mxu0 0
        %1664 = vmatprep.subr.bf16.mxu0 0
        %1665 = vmatpush1.bf16.msra.mxu0 0
        %1666 = vmatprep.subr.bf16.mxu0 0
        %1667 = vmatpush1.bf16.msra.mxu0 0
        %1668 = vmatprep.subr.bf16.mxu0 0
        %1669 = vmatpush1.bf16.msra.mxu0 0
        %1670 = vmatprep.subr.bf16.mxu0 0
        %1671 = vmatpush1.bf16.msra.mxu0 %v1654
        %1672 = vmatprep.subr.bf16.mxu0 0
        %1673 = vmatpush1.bf16.msra.mxu0 %v1653
        %1674 = vmatprep.subr.bf16.mxu0 0
        %1675 = vmatpush1.bf16.msra.mxu0 %v1652
        %1676 = vmatprep.subr.bf16.mxu0 0
        %1677 = vmatpush1.bf16.msra.mxu0 %v1651
        %1678 = vmatprep.subr.bf16.mxu0 0
        %1679 = vmatpush2.bf16.msra.mxu0 0
        %1680 = vmatprep.subr.bf16.mxu0 0
        %1681 = vmatpush2.bf16.msra.mxu0 0
        %1682 = vmatprep.subr.bf16.mxu0 0
        %1683 = vmatpush2.bf16.msra.mxu0 0
        %1684 = vmatprep.subr.bf16.mxu0 0
        %1685 = vmatpush2.bf16.msra.mxu0 0
        %1686 = vmatprep.subr.bf16.mxu0 0
        %1687 = vmatpush2.bf16.msra.mxu0 0
        %1688 = vmatprep.subr.bf16.mxu0 0
        %1689 = vmatpush2.bf16.msra.mxu0 0
        %1690 = vmatprep.subr.bf16.mxu0 0
        %1691 = vmatpush2.bf16.msra.mxu0 0
        %1692 = vmatprep.subr.bf16.mxu0 0
        %1693 = vmatpush2.bf16.msra.mxu0 0
        %1694 = vmatprep.mubr.bf16.mxu0 0
        %1695 = vmatmul.mubr.bf16.gmra.mxu0 %v1660
        %v1696 = vpop.f32.mrf.mxu0
        %v1697 = vadd.f32 0.0, %v1696
        %v1698 = vpop.f32.mrf.mxu0
        %v1699 = vpop.f32.mrf.mxu0
        %v1700 = vpop.f32.mrf.mxu0
        %1701 = vdwg.mxu0
        %v1702 = vadd.f32 %v1617, %v1697
        %v1703 = vstv %s1464
        %v1704 = vmul.f32 %v1702, %v1703
        %s1705 = sld [smem:[#allocation2 + $0x4]]
        %v1706 = vld [vmem:[%s6] sm:$0xf]
        %v1707 = vld [vmem:[%s6 + $0x4] sm:$0xf]
        %v1708 = vld [vmem:[%s6 + $0x8] sm:$0xf]
        %v1709 = vld [vmem:[%s6 + $0xc] sm:$0xf]
        %v1710 = vld [vmem:[%s6 + $0x10] sm:$0xf]
        %v1711 = vld [vmem:[%s6 + $0x14] sm:$0xf]
        %v1712 = vld [vmem:[%s6 + $0x18] sm:$0xf]
        %v1713 = vld [vmem:[%s6 + $0x1c] sm:$0xf]
        %s1714 = scalar_lea.vmem %s6, 32
        %v1715 = vld [vmem:[%s1714] sm:$0xf]
        %v1716 = vld [vmem:[%s1714 + $0x4] sm:$0xf]
        %v1717 = vld [vmem:[%s1714 + $0x8] sm:$0xf]
        %v1718 = vld [vmem:[%s1714 + $0xc] sm:$0xf]
        %v1719 = vld [vmem:[%s1714 + $0x10] sm:$0xf]
        %v1720 = vld [vmem:[%s1714 + $0x14] sm:$0xf]
        %v1721 = vld [vmem:[%s1714 + $0x18] sm:$0xf]
        %v1722 = vld [vmem:[%s1714 + $0x1c] sm:$0xf]
        %v1723 = vshrl.u32 %v1478, 16
        %v1733 = vunpack.c.l.b16 %v1715
        %v1734 = vunpack.c.l.b16 %v1716
        %v1735 = vunpack.c.l.b16 %v1717
        %v1736 = vunpack.c.l.b16 %v1718
        %v1737 = vunpack.c.l.b16 %v1719
        %v1738 = vunpack.c.l.b16 %v1720
        %v1739 = vunpack.c.l.b16 %v1721
        %v1740 = vunpack.c.l.b16 %v1722
        %v1741 = vpack.c.b16 %v1734, %v1733
        %v1742 = vpack.c.b16 %v1736, %v1735
        %v1743 = vpack.c.b16 %v1738, %v1737
        %v1744 = vpack.c.b16 %v1740, %v1739
        %v1750 = vsel %vm845, %v1723, 0
        %1752 = vmatprep.subr.bf16.mxu0 0
        %1753 = vmatpush1.bf16.msra.mxu0 0
        %1754 = vmatprep.subr.bf16.mxu0 0
        %1755 = vmatpush1.bf16.msra.mxu0 0
        %1756 = vmatprep.subr.bf16.mxu0 0
        %1757 = vmatpush1.bf16.msra.mxu0 0
        %1758 = vmatprep.subr.bf16.mxu0 0
        %1759 = vmatpush1.bf16.msra.mxu0 0
        %1760 = vmatprep.subr.bf16.mxu0 0
        %1761 = vmatpush1.bf16.msra.mxu0 %v1744
        %1762 = vmatprep.subr.bf16.mxu0 0
        %1763 = vmatpush1.bf16.msra.mxu0 %v1743
        %1764 = vmatprep.subr.bf16.mxu0 0
        %1765 = vmatpush1.bf16.msra.mxu0 %v1742
        %1766 = vmatprep.subr.bf16.mxu0 0
        %1767 = vmatpush1.bf16.msra.mxu0 %v1741
        %1768 = vmatprep.subr.bf16.mxu0 0
        %1769 = vmatpush2.bf16.msra.mxu0 0
        %1770 = vmatprep.subr.bf16.mxu0 0
        %1771 = vmatpush2.bf16.msra.mxu0 0
        %1772 = vmatprep.subr.bf16.mxu0 0
        %1773 = vmatpush2.bf16.msra.mxu0 0
        %1774 = vmatprep.subr.bf16.mxu0 0
        %1775 = vmatpush2.bf16.msra.mxu0 0
        %1776 = vmatprep.subr.bf16.mxu0 0
        %1777 = vmatpush2.bf16.msra.mxu0 0
        %1778 = vmatprep.subr.bf16.mxu0 0
        %1779 = vmatpush2.bf16.msra.mxu0 0
        %1780 = vmatprep.subr.bf16.mxu0 0
        %1781 = vmatpush2.bf16.msra.mxu0 0
        %1782 = vmatprep.subr.bf16.mxu0 0
        %1783 = vmatpush2.bf16.msra.mxu0 0
        %1784 = vmatprep.mubr.bf16.mxu0 0
        %1785 = vmatmul.mubr.bf16.gmra.mxu0 %v1750
        %v1786 = vpop.f32.mrf.mxu0
        %v1787 = vadd.f32 0.0, %v1786
        %v1788 = vpop.f32.mrf.mxu0
        %v1789 = vpop.f32.mrf.mxu0
        %v1790 = vpop.f32.mrf.mxu0
        %1791 = vdwg.mxu0
        %v1800 = vunpack.c.l.b16 %v1706
        %v1801 = vunpack.c.l.b16 %v1707
        %v1802 = vunpack.c.l.b16 %v1708
        %v1803 = vunpack.c.l.b16 %v1709
        %v1804 = vunpack.c.l.b16 %v1710
        %v1805 = vunpack.c.l.b16 %v1711
        %v1806 = vunpack.c.l.b16 %v1712
        %v1807 = vunpack.c.l.b16 %v1713
        %v1808 = vpack.c.b16 %v1801, %v1800
        %v1809 = vpack.c.b16 %v1803, %v1802
        %v1810 = vpack.c.b16 %v1805, %v1804
        %v1811 = vpack.c.b16 %v1807, %v1806
        %1816 = vmatprep.subr.bf16.mxu0 0
        %1817 = vmatpush1.bf16.msra.mxu0 0
        %1818 = vmatprep.subr.bf16.mxu0 0
        %1819 = vmatpush1.bf16.msra.mxu0 0
        %1820 = vmatprep.subr.bf16.mxu0 0
        %1821 = vmatpush1.bf16.msra.mxu0 0
        %1822 = vmatprep.subr.bf16.mxu0 0
        %1823 = vmatpush1.bf16.msra.mxu0 0
        %1824 = vmatprep.subr.bf16.mxu0 0
        %1825 = vmatpush1.bf16.msra.mxu0 %v1811
        %1826 = vmatprep.subr.bf16.mxu0 0
        %1827 = vmatpush1.bf16.msra.mxu0 %v1810
        %1828 = vmatprep.subr.bf16.mxu0 0
        %1829 = vmatpush1.bf16.msra.mxu0 %v1809
        %1830 = vmatprep.subr.bf16.mxu0 0
        %1831 = vmatpush1.bf16.msra.mxu0 %v1808
        %1832 = vmatprep.subr.bf16.mxu0 0
        %1833 = vmatpush2.bf16.msra.mxu0 0
        %1834 = vmatprep.subr.bf16.mxu0 0
        %1835 = vmatpush2.bf16.msra.mxu0 0
        %1836 = vmatprep.subr.bf16.mxu0 0
        %1837 = vmatpush2.bf16.msra.mxu0 0
        %1838 = vmatprep.subr.bf16.mxu0 0
        %1839 = vmatpush2.bf16.msra.mxu0 0
        %1840 = vmatprep.subr.bf16.mxu0 0
        %1841 = vmatpush2.bf16.msra.mxu0 0
        %1842 = vmatprep.subr.bf16.mxu0 0
        %1843 = vmatpush2.bf16.msra.mxu0 0
        %1844 = vmatprep.subr.bf16.mxu0 0
        %1845 = vmatpush2.bf16.msra.mxu0 0
        %1846 = vmatprep.subr.bf16.mxu0 0
        %1847 = vmatpush2.bf16.msra.mxu0 0
        %1848 = vmatprep.mubr.bf16.mxu0 0
        %1849 = vmatmul.mubr.bf16.gmra.mxu0 %v1513
        %v1850 = vpop.f32.mrf.mxu0
        %v1851 = vadd.f32 %v1787, %v1850
        %v1852 = vpop.f32.mrf.mxu0
        %v1853 = vpop.f32.mrf.mxu0
        %v1854 = vpop.f32.mrf.mxu0
        %1855 = vdwg.mxu0
        %v1856 = vstv %s1705
        %v1857 = vmul.f32 %v1851, %v1856
        %vm1858 = vcmask 9216
        %1859 = vst.msk [vmem:[%s427] sm:$0x3] %vm1858, %v1704
        %vm1860 = vcmask 32768
        %1861 = vst.msk [vmem:[%s433] sm:$0x1] %vm1860, %v1857
        %s1862 = sand.u32 %s255, 1
        %s1863 = scalar_lea.sflag [#allocation4], %s1862
        %s1864 = sand.u32 %s255, 1
        %s1865 = smul.addr %s1864, 2
        %s1866 = scalar_lea.vmem [#allocation9], %s1865
        %s1867 = sand.u32 %s281, 1
        %s1868 = scalar_lea.sflag [#allocation11], %s1867
        %s1869 = sand.u32 %s281, 1
        %s1870 = scalar_lea.vmem [#allocation10], %s1869
        // Predicated region
        $region73: #{_lambda_.1} parent=59 // pred_check
          %p1871 = pneg %p265
        $region74: #{_lambda_.1} parent=59 // pred_check_branch
          %1873 = sbr.rel (%p1871) target = $region76
        $region75: #{_lambda_.1} parent=59 // pred_region
          %s1875 = ssub.s32 32, 32
          %1876 = vsyncadd %s1863, %s1875
          %s1877 = smul.addr %s32, 32
          %s1878 = scalar_lea.hbm %s10, %s1877
          %s1880 = sshll.u32 %s1866, 4
          %s1881 = int_to_ptr.vmem [resolvable:$true] %s1880
          %1883 = dma.vmem_to_hbm [thread:$0]  %s1881, 32, %s1878, %s1863
        $region76: #{_lambda_.1} parent=59 // pred_fallthru
          _
        // Predicated region
        $region77: #{_lambda_.1} parent=59 // pred_check
          %p1884 = pneg %p291
        $region78: #{_lambda_.1} parent=59 // pred_check_branch
          %1886 = sbr.rel (%p1884) target = $region80
        $region79: #{_lambda_.1} parent=59 // pred_region
          %s1888 = ssub.s32 16, 16
          %1889 = vsyncadd %s1868, %s1888
          %s1890 = smul.addr %s32, 16
          %s1891 = scalar_lea.hbm %s11, %s1890
          %s1893 = sshll.u32 %s1870, 4
          %s1894 = int_to_ptr.vmem [resolvable:$true] %s1893
          %1896 = dma.vmem_to_hbm [thread:$0]  %s1894, 16, %s1891, %s1868
        $region80: #{_lambda_.1} parent=59 // pred_fallthru
          _
      $region60: #{_lambda_.1} parent=5 // pred_fallthru
        _
      %p1897 = scmp.le.s32.totalorder 2, %s27
      // Predicated region
      $region81: #{_lambda_.1} parent=5 // pred_check
        %p1898 = pneg %p1897
      $region82: #{_lambda_.1} parent=5 // pred_check_branch
        %1900 = sbr.rel (%p1898) target = $region84
      $region83: #{_lambda_.1} parent=5 // pred_region
        %s1901 = ssub.s32 %s27, 2
        // Predicated region
        $region85: #{_lambda_.1} parent=83 // pred_check
          %p1902 = pneg %p271
        $region86: #{_lambda_.1} parent=83 // pred_check_branch
          %1904 = sbr.rel (%p1902) target = $region88
        $region87: #{_lambda_.1} parent=83 // pred_region
          %s1905 = sand.u32 %s256, 1
          %s1906 = scalar_lea.sflag [#allocation4], %s1905
          %s1907 = sand.u32 %s256, 1
          %s1908 = smul.addr %s1907, 2
          %s1909 = scalar_lea.vmem [#allocation9], %s1908
          %1910 = dma.done %s1906, 32
        $region88: #{_lambda_.1} parent=83 // pred_fallthru
          _
        // Predicated region
        $region89: #{_lambda_.1} parent=83 // pred_check
          %p1911 = pneg %p297
        $region90: #{_lambda_.1} parent=83 // pred_check_branch
          %1913 = sbr.rel (%p1911) target = $region92
        $region91: #{_lambda_.1} parent=83 // pred_region
          %s1914 = sand.u32 %s282, 1
          %s1915 = scalar_lea.sflag [#allocation11], %s1914
          %s1916 = sand.u32 %s282, 1
          %s1917 = scalar_lea.vmem [#allocation10], %s1916
          %1918 = dma.done %s1915, 16
        $region92: #{_lambda_.1} parent=83 // pred_fallthru
          _
      $region84: #{_lambda_.1} parent=5 // pred_fallthru
        _
    $region6: #{_lambda_.1} parent=1 // loop_footer
      %s31 = sadd.s32 1, %s27
    $region7: #{_lambda_.1} parent=1 // loop_footer_branch
      %26 = sbr.rel target = $region3
    $region8: #{_lambda_.1} parent=1 // loop_exit
      _
    %1919 = vsyncpa [#allocation3], 1
    %s1920 = scalar_lea.sflag [#allocation3], 1
    %1921 = vsyncpa %s1920, 1
    %1922 = vsyncpa [#allocation8], 1
    %1923 = vsyncpa [#allocation4], 1
    %s1924 = scalar_lea.sflag [#allocation4], 1
    %1925 = vsyncpa %s1924, 1
    %1926 = vsyncpa [#allocation11], 1
    %s1927 = scalar_lea.sflag [#allocation11], 1
    %1928 = vsyncpa %s1927, 1
    %1929 = vsyncpa [#allocation5], 1
    %s1930 = scalar_lea.sflag [#allocation5], 1
    %1931 = vsyncpa %s1930, 1

</llo_original>
